<compile_context>
chip_gen: v5e
topology: v5e:2x2
jax: 0.10.0
libtpu: 0.0.40
codegen_flags: <defaults>
</compile_context>

<pallas_src>
import math

import jax
import jax.numpy as jnp
from jax.experimental import pallas as pl
from jax.experimental.pallas import tpu as pltpu


def _sigmoid(z):
    # sigmoid(z) == 0.5 * tanh(0.5 * z) + 0.5
    # One EUP transcendental per element and numerically safe for any z.
    return 0.5 * jnp.tanh(0.5 * z) + 0.5


def _make_kernel(n_hidden):
    """Kernel body: `n_hidden` sigmoid layers + fused 4-wide head.

    Batch-on-lanes: every activation is [width, batch_tile] (lane-dense).
    """

    def kernel(*refs):
        n_in = 1 + 2 * n_hidden + 2          # x, (w,b)*n_hidden, wy_fused, by_fused
        in_refs = refs[:n_in]
        out_ref = refs[n_in]

        h = in_refs[0][...]                  # [d_in, tile]
        idx = 1
        for _ in range(n_hidden):
            w = in_refs[idx][...]            # [out, in]  (PyTorch layout)
            b = in_refs[idx + 1][...]        # [out, 1]
            idx += 2
            z = jnp.dot(w, h, preferred_element_type=jnp.float32) + b
            h = _sigmoid(z)                  # [out, tile], lane-dense

        wy = in_refs[idx][...]               # [4, NL[-2]]  fused y1..y4 head
        by = in_refs[idx + 1][...]           # [4, 1]
        # Lane-dense (4, tile) store -> unmasked vst.
        out_ref[...] = jnp.dot(wy, h, preferred_element_type=jnp.float32) + by

    return kernel


def _tensorcores_per_chip():
    """Best-effort TensorCore-per-chip query; defaults to 1 (v5e/v6e)."""
    try:
        info = pltpu.get_tpu_info()
        for attr in ("num_tensorcores", "tensorcore_count", "num_cores",
                     "cores_per_chip"):
            n = getattr(info, attr, None)
            if isinstance(n, int) and n > 0:
                return n
    except Exception:
        pass
    try:
        kind = jax.devices()[0].device_kind.lower()
        if "v7" in kind:
            return 2
    except Exception:
        pass
    return 1


def init_params(NL, key):
    """PyTorch-Linear-style init (uniform +-1/sqrt(fan_in)), PyTorch layout:
    weights [out, in], biases [out].  The 4 heads are kept separate."""
    n_hidden = len(NL) - 2
    params = []
    for i in range(n_hidden):
        fan_in, fan_out = NL[i], NL[i + 1]
        bound = 1.0 / math.sqrt(fan_in)
        key, kw, kb = jax.random.split(key, 3)
        w = jax.random.uniform(kw, (fan_out, fan_in), jnp.float32, -bound, bound)
        b = jax.random.uniform(kb, (fan_out,), jnp.float32, -bound, bound)
        params += [w, b]
    fan_in = NL[-2]
    bound = 1.0 / math.sqrt(fan_in)
    for _ in range(4):  # layer_y1 .. layer_y4
        key, kw, kb = jax.random.split(key, 3)
        w = jax.random.uniform(kw, (1, fan_in), jnp.float32, -bound, bound)
        b = jax.random.uniform(kb, (1,), jnp.float32, -bound, bound)
        params += [w, b]
    return params


def pinn_shockwave_forward(x, params, NL, batch_tile=None, max_batch_tile=4096):
    """PINN_Shockwave.forward via Pallas.

    x: [B, NL[0]] f32 (any B; padded internally).
    params: PyTorch-layout list (see init_params).
    Returns (y1, y2, y3, y4), each [B, 1] f32.
    """
    B, d_in = x.shape
    assert d_in == NL[0]
    n_hidden = len(NL) - 2

    # --- Batch tiling: lane-aligned (multiple of 128), generation-aware. ---
    if batch_tile is None:
        lanes = max(128, pl.cdiv(B, 128) * 128)
        # >=2 grid steps only pay off when the parallel batch axis can shard
        # across multiple TensorCores (v7x); otherwise a grid step is just a
        # sequential loop iteration with fixed overhead -> run one fat step.
        steps = 2 if (_tensorcores_per_chip() >= 2 and lanes >= 256) else 1
        batch_tile = pl.cdiv(lanes // steps, 128) * 128
    batch_tile = max(128, min(pl.cdiv(batch_tile, 128) * 128, max_batch_tile))
    B_pad = pl.cdiv(B, batch_tile) * batch_tile
    grid = (B_pad // batch_tile,)

    # --- Batch-on-lanes layout: x -> [d_in, B_pad]. ---
    xt = x.T
    if B_pad != B:
        xt = jnp.pad(xt, ((0, 0), (0, B_pad - B)))

    # --- Kernel params: hidden (w [out,in], b [out,1]) + fused 4-wide head. ---
    kernel_params = []
    for i in range(n_hidden):
        w, b = params[2 * i], params[2 * i + 1]
        kernel_params += [w, b.reshape(-1, 1)]
    head = params[2 * n_hidden:]
    wy = jnp.concatenate([head[2 * k] for k in range(4)], axis=0)            # [4, NL[-2]]
    by = jnp.concatenate([head[2 * k + 1] for k in range(4)], axis=0).reshape(4, 1)
    kernel_params += [wy, by]

    in_specs = [pl.BlockSpec((d_in, batch_tile), lambda i: (0, i))]
    for p in kernel_params:
        # Full-array block, same block index every step -> stays VMEM-resident.
        in_specs.append(pl.BlockSpec(p.shape, lambda i: (0, 0)))
    out_specs = pl.BlockSpec((4, batch_tile), lambda i: (0, i))
    out_shape = jax.ShapeDtypeStruct((4, B_pad), jnp.float32)

    # Advisory cost estimate (tiny, overhead-bound kernel).
    mm_flops = sum(NL[i] * NL[i + 1] for i in range(n_hidden)) + NL[-2] * 4
    cost = pl.CostEstimate(
        flops=int(2 * B_pad * mm_flops),
        transcendentals=int(B_pad * sum(NL[1:n_hidden + 1])),
        bytes_accessed=int(
            4 * B_pad * (NL[0] + 4)
            + sum(int(p.size) * p.dtype.itemsize for p in kernel_params)
        ),
    )

    fn = pl.pallas_call(
        _make_kernel(n_hidden),
        grid=grid,
        in_specs=in_specs,
        out_specs=out_specs,
        out_shape=out_shape,
        compiler_params=pltpu.CompilerParams(dimension_semantics=("parallel",)),
        cost_estimate=cost,
    )
    y = fn(xt, *kernel_params)                 # [4, B_pad], lane-dense store
    # Split y1..y4 with cheap XLA slices / transposes in the wrapper.
    return tuple(y[k:k + 1, :B].T for k in range(4))


def reference_forward(x, params, NL):
    """Plain-JAX reference with the original (PyTorch-layout) parameters."""
    n_hidden = len(NL) - 2
    h = x
    idx = 0
    for _ in range(n_hidden):
        w, b = params[idx], params[idx + 1]
        idx += 2
        h = jax.nn.sigmoid(h @ w.T + b)
    outs = []
    for _ in range(4):
        w, b = params[idx], params[idx + 1]
        idx += 2
        outs.append(h @ w.T + b)
    return tuple(outs)


if __name__ == "__main__":
    # Keep XLA-side matmuls at f32 accuracy so the reference matches the
    # Pallas MXU result closely.
    jax.config.update("jax_default_matmul_precision", "highest")

    # Module-consistent shapes: input dim 2 (x, y), two hidden layers of 32,
    # four scalar heads; batch = the module's collocation batch_size (500,
    # padded internally to a 128-aligned lane tile).
    NL = [2, 32, 32, 1]
    B = 500

    key = jax.random.PRNGKey(0)
    key, kx = jax.random.split(key)
    x = jax.random.uniform(kx, (B, NL[0]), jnp.float32)
    params = init_params(NL, jax.random.PRNGKey(0))

    outs = pinn_shockwave_forward(x, params, NL)
    jax.block_until_ready(outs)

    refs = reference_forward(x, params, NL)
    for got, want in zip(outs, refs):
        assert got.shape == (B, 1)
        assert jnp.allclose(got, want, atol=1e-4, rtol=1e-4), float(
            jnp.max(jnp.abs(got - want))
        )

    # TODO(synk): loss_function / Fluid_Variables / training loop (autograd,
    # Adam, TensorBoard) and the frozen Distance/Boundary submodules are
    # outside forward() and not implemented here.
    print("KERNEL_OK")
</pallas_src>

<mosaic_0001>
module attributes {stable_mosaic.version = 11 : i64} {
  func.func @kernel(%arg0: i32, %arg1: memref<2x512xf32, #tpu.memory_space<vmem>>, %arg2: memref<32x2xf32, #tpu.memory_space<vmem>>, %arg3: memref<32x1xf32, #tpu.memory_space<vmem>>, %arg4: memref<32x32xf32, #tpu.memory_space<vmem>>, %arg5: memref<32x1xf32, #tpu.memory_space<vmem>>, %arg6: memref<4x32xf32, #tpu.memory_space<vmem>>, %arg7: memref<4x1xf32, #tpu.memory_space<vmem>>, %arg8: memref<4x512xf32, #tpu.memory_space<vmem>>) attributes {dimension_semantics = [#tpu.dimension_semantics<parallel>], iteration_bounds = array<i64: 1>, scalar_prefetch = 0 : i64, scratch_operands = 0 : i64, tpu.core_type = #tpu.core_type<tc>, window_params = [{transform_indices = @transform_0, window_bounds = array<i64: 2, 512>}, {pipeline_mode = #tpu.pipeline_mode<synchronous>, transform_indices = @transform_1, window_bounds = array<i64: 32, 2>}, {pipeline_mode = #tpu.pipeline_mode<synchronous>, transform_indices = @transform_2, window_bounds = array<i64: 32, 1>}, {pipeline_mode = #tpu.pipeline_mode<synchronous>, transform_indices = @transform_3, window_bounds = array<i64: 32, 32>}, {pipeline_mode = #tpu.pipeline_mode<synchronous>, transform_indices = @transform_4, window_bounds = array<i64: 32, 1>}, {pipeline_mode = #tpu.pipeline_mode<synchronous>, transform_indices = @transform_5, window_bounds = array<i64: 4, 32>}, {pipeline_mode = #tpu.pipeline_mode<synchronous>, transform_indices = @transform_6, window_bounds = array<i64: 4, 1>}, {transform_indices = @transform_7, window_bounds = array<i64: 4, 512>}]} {
    %c0 = arith.constant 0 : index
    %c0_0 = arith.constant 0 : index
    %0 = vector.load %arg1[%c0, %c0_0] : memref<2x512xf32, #tpu.memory_space<vmem>>, vector<2x512xf32>
    %c0_1 = arith.constant 0 : index
    %c0_2 = arith.constant 0 : index
    %1 = vector.load %arg2[%c0_1, %c0_2] : memref<32x2xf32, #tpu.memory_space<vmem>>, vector<32x2xf32>
    %c0_3 = arith.constant 0 : index
    %c0_4 = arith.constant 0 : index
    %2 = vector.load %arg3[%c0_3, %c0_4] : memref<32x1xf32, #tpu.memory_space<vmem>>, vector<32x1xf32>
    %cst = arith.constant dense<0.000000e+00> : vector<32x512xf32>
    %3 = tpu.matmul %1, %0, %cst {dimension_numbers = #tpu.dot_dimension_numbers<[1], [0], [0], [1], [0, 0, 1, 1], [], []>, precision = #tpu.contract_precision<fp32>} : vector<32x2xf32>, vector<2x512xf32>, vector<32x512xf32> -> vector<32x512xf32>
    %4 = vector.broadcast %2 : vector<32x1xf32> to vector<32x512xf32>
    %5 = arith.addf %3, %4 : vector<32x512xf32>
    %cst_5 = arith.constant 5.000000e-01 : f32
    %6 = vector.broadcast %cst_5 : f32 to vector<32x512xf32>
    %7 = arith.mulf %6, %5 : vector<32x512xf32>
    %8 = math.tanh %7 : vector<32x512xf32>
    %cst_6 = arith.constant 5.000000e-01 : f32
    %9 = vector.broadcast %cst_6 : f32 to vector<32x512xf32>
    %10 = arith.mulf %9, %8 : vector<32x512xf32>
    %cst_7 = arith.constant 5.000000e-01 : f32
    %11 = vector.broadcast %cst_7 : f32 to vector<32x512xf32>
    %12 = arith.addf %10, %11 : vector<32x512xf32>
    %c0_8 = arith.constant 0 : index
    %c0_9 = arith.constant 0 : index
    %13 = vector.load %arg4[%c0_8, %c0_9] : memref<32x32xf32, #tpu.memory_space<vmem>>, vector<32x32xf32>
    %c0_10 = arith.constant 0 : index
    %c0_11 = arith.constant 0 : index
    %14 = vector.load %arg5[%c0_10, %c0_11] : memref<32x1xf32, #tpu.memory_space<vmem>>, vector<32x1xf32>
    %cst_12 = arith.constant dense<0.000000e+00> : vector<32x512xf32>
    %15 = tpu.matmul %13, %12, %cst_12 {dimension_numbers = #tpu.dot_dimension_numbers<[1], [0], [0], [1], [0, 0, 1, 1], [], []>, precision = #tpu.contract_precision<fp32>} : vector<32x32xf32>, vector<32x512xf32>, vector<32x512xf32> -> vector<32x512xf32>
    %16 = vector.broadcast %14 : vector<32x1xf32> to vector<32x512xf32>
    %17 = arith.addf %15, %16 : vector<32x512xf32>
    %cst_13 = arith.constant 5.000000e-01 : f32
    %18 = vector.broadcast %cst_13 : f32 to vector<32x512xf32>
    %19 = arith.mulf %18, %17 : vector<32x512xf32>
    %20 = math.tanh %19 : vector<32x512xf32>
    %cst_14 = arith.constant 5.000000e-01 : f32
    %21 = vector.broadcast %cst_14 : f32 to vector<32x512xf32>
    %22 = arith.mulf %21, %20 : vector<32x512xf32>
    %cst_15 = arith.constant 5.000000e-01 : f32
    %23 = vector.broadcast %cst_15 : f32 to vector<32x512xf32>
    %24 = arith.addf %22, %23 : vector<32x512xf32>
    %c0_16 = arith.constant 0 : index
    %c0_17 = arith.constant 0 : index
    %25 = vector.load %arg6[%c0_16, %c0_17] : memref<4x32xf32, #tpu.memory_space<vmem>>, vector<4x32xf32>
    %c0_18 = arith.constant 0 : index
    %c0_19 = arith.constant 0 : index
    %26 = vector.load %arg7[%c0_18, %c0_19] : memref<4x1xf32, #tpu.memory_space<vmem>>, vector<4x1xf32>
    %cst_20 = arith.constant dense<0.000000e+00> : vector<4x512xf32>
    %27 = tpu.matmul %25, %24, %cst_20 {dimension_numbers = #tpu.dot_dimension_numbers<[1], [0], [0], [1], [0, 0, 1, 1], [], []>, precision = #tpu.contract_precision<fp32>} : vector<4x32xf32>, vector<32x512xf32>, vector<4x512xf32> -> vector<4x512xf32>
    %28 = vector.broadcast %26 : vector<4x1xf32> to vector<4x512xf32>
    %29 = arith.addf %27, %28 : vector<4x512xf32>
    %c0_21 = arith.constant 0 : index
    %c0_22 = arith.constant 0 : index
    %30 = vector.load %arg8[%c0_21, %c0_22] : memref<4x512xf32, #tpu.memory_space<vmem>>, vector<4x512xf32>
    tpu.vector_store %arg8[%c0_21, %c0_22], %29 {strides = array<i32>} : memref<4x512xf32, #tpu.memory_space<vmem>>, vector<4x512xf32>,
    return
  }
  func.func @transform_0(%arg0: i32) -> (i32, i32) {
    %c0_i32 = arith.constant 0 : i32
    %c0_i32_0 = arith.constant 0 : i32
    return %c0_i32, %arg0 : i32, i32
  }
  func.func @transform_1(%arg0: i32) -> (i32, i32) {
    %c0_i32 = arith.constant 0 : i32
    %c0_i32_0 = arith.constant 0 : i32
    %c0_i32_1 = arith.constant 0 : i32
    return %c0_i32, %c0_i32_0 : i32, i32
  }
  func.func @transform_2(%arg0: i32) -> (i32, i32) {
    %c0_i32 = arith.constant 0 : i32
    %c0_i32_0 = arith.constant 0 : i32
    %c0_i32_1 = arith.constant 0 : i32
    return %c0_i32, %c0_i32_0 : i32, i32
  }
  func.func @transform_3(%arg0: i32) -> (i32, i32) {
    %c0_i32 = arith.constant 0 : i32
    %c0_i32_0 = arith.constant 0 : i32
    %c0_i32_1 = arith.constant 0 : i32
    return %c0_i32, %c0_i32_0 : i32, i32
  }
  func.func @transform_4(%arg0: i32) -> (i32, i32) {
    %c0_i32 = arith.constant 0 : i32
    %c0_i32_0 = arith.constant 0 : i32
    %c0_i32_1 = arith.constant 0 : i32
    return %c0_i32, %c0_i32_0 : i32, i32
  }
  func.func @transform_5(%arg0: i32) -> (i32, i32) {
    %c0_i32 = arith.constant 0 : i32
    %c0_i32_0 = arith.constant 0 : i32
    %c0_i32_1 = arith.constant 0 : i32
    return %c0_i32, %c0_i32_0 : i32, i32
  }
  func.func @transform_6(%arg0: i32) -> (i32, i32) {
    %c0_i32 = arith.constant 0 : i32
    %c0_i32_0 = arith.constant 0 : i32
    %c0_i32_1 = arith.constant 0 : i32
    return %c0_i32, %c0_i32_0 : i32, i32
  }
  func.func @transform_7(%arg0: i32) -> (i32, i32) {
    %c0_i32 = arith.constant 0 : i32
    %c0_i32_0 = arith.constant 0 : i32
    return %c0_i32, %arg0 : i32, i32
  }
}

</mosaic_0001>

<llo_original>
// kernel: tpu_custom_call.1
$region0: #{tpu_custom_call.1}
  #allocation0 [shape = 'u32[]', space=smem, size = 0x4, offset = 0x4, fixed_abs, tag = 'smem constant byte address 0x4 - core index']
  #allocation1 [shape = 'u32[72,128]{1,0:T(1,128)}', space=vmem, size = 0x9000, scoped, tag = 'internal scratch']
  %s0 = inlined_call_operand.vmem [shape: f32[2,512], index: 0, kind: input, shape index: {}]
  %s1 = inlined_call_operand.vmem [shape: f32[32,2], index: 1, kind: input, shape index: {}]
  %s2 = inlined_call_operand.vmem [shape: f32[32,1], index: 2, kind: input, shape index: {}]
  %s3 = inlined_call_operand.vmem [shape: f32[32,32], index: 3, kind: input, shape index: {}]
  %s4 = inlined_call_operand.vmem [shape: f32[32,1], index: 4, kind: input, shape index: {}]
  %s5 = inlined_call_operand.vmem [shape: f32[4,32], index: 5, kind: input, shape index: {}]
  %s6 = inlined_call_operand.vmem [shape: f32[4,1], index: 6, kind: input, shape index: {}]
  %s7 = inlined_call_operand.hbm [shape: f32[4,512], index: 7, kind: output, shape index: {}]
  %s8 = sld [smem:[#allocation0]]
  $region38: #{tpu_custom_call.1} parent=0
    _
  %s10 = ssub.s32 1, %s8
  %s11 = scalar_select 0, %s10, %s8
  $region1: #{tpu_custom_call.1} parent=0
    #allocation2 [shape = 'u8[8192]{0}', space=vmem, size = 0x2000, scoped, tag = 'output window, operand 0, single buffered']
    #allocation3 [shape = 's32[1]{0}', space=sflag, size = 0x4, scoped, tag = 'scoped memory for tpu_custom_call.1']
    %12 = vsyncpa [#allocation3], 0
    // Predicated region
    $region2: #{tpu_custom_call.1} parent=1 // pred_check
      _
    $region3: #{tpu_custom_call.1} parent=1 // pred_check_branch
      %14 = sbr.rel (0) target = $region5
    $region4: #{tpu_custom_call.1} parent=1 // pred_region
      _
    $region5: #{tpu_custom_call.1} parent=1 // pred_fallthru
      _
    // Predicated region
    $region6: #{tpu_custom_call.1} parent=1 // pred_check
      _
    $region7: #{tpu_custom_call.1} parent=1 // pred_check_branch
      %16 = sbr.rel (0) target = $region9
    $region8: #{tpu_custom_call.1} parent=1 // pred_region
      _
    $region9: #{tpu_custom_call.1} parent=1 // pred_fallthru
      _
    // Predicated region
    $region10: #{tpu_custom_call.1} parent=1 // pred_check
      _
    $region11: #{tpu_custom_call.1} parent=1 // pred_check_branch
      %18 = sbr.rel (0) target = $region13
    $region12: #{tpu_custom_call.1} parent=1 // pred_region
      _
    $region13: #{tpu_custom_call.1} parent=1 // pred_fallthru
      _
    // Predicated region
    $region14: #{tpu_custom_call.1} parent=1 // pred_check
      _
    $region15: #{tpu_custom_call.1} parent=1 // pred_check_branch
      %20 = sbr.rel (0) target = $region17
    $region16: #{tpu_custom_call.1} parent=1 // pred_region
      _
    $region17: #{tpu_custom_call.1} parent=1 // pred_fallthru
      _
    // Predicated region
    $region18: #{tpu_custom_call.1} parent=1 // pred_check
      _
    $region19: #{tpu_custom_call.1} parent=1 // pred_check_branch
      %22 = sbr.rel (0) target = $region21
    $region20: #{tpu_custom_call.1} parent=1 // pred_region
      _
    $region21: #{tpu_custom_call.1} parent=1 // pred_fallthru
      _
    // Predicated region
    $region22: #{tpu_custom_call.1} parent=1 // pred_check
      _
    $region23: #{tpu_custom_call.1} parent=1 // pred_check_branch
      %24 = sbr.rel (0) target = $region25
    $region24: #{tpu_custom_call.1} parent=1 // pred_region
      _
    $region25: #{tpu_custom_call.1} parent=1 // pred_fallthru
      _
    // Predicated region
    $region26: #{tpu_custom_call.1} parent=1 // pred_check
      _
    $region27: #{tpu_custom_call.1} parent=1 // pred_check_branch
      %26 = sbr.rel (0) target = $region29
    $region28: #{tpu_custom_call.1} parent=1 // pred_region
      _
    $region29: #{tpu_custom_call.1} parent=1 // pred_fallthru
      _
    %v27 = vld [vmem:[%s0] sm:$0xff]
    %v28 = vld [vmem:[%s1] sm:$0xff]
    %v29 = vld [vmem:[%s1 + $0x8] sm:$0xff]
    %v30 = vld [vmem:[%s1 + $0x10] sm:$0xff]
    %v31 = vld [vmem:[%s1 + $0x18] sm:$0xff]
    %v32 = vld [vmem:[%s2] sm:$0xff]
    %v33 = vld [vmem:[%s2 + $0x8] sm:$0xff]
    %v34 = vld [vmem:[%s2 + $0x10] sm:$0xff]
    %v35 = vld [vmem:[%s2 + $0x18] sm:$0xff]
    %37 = vset.pattern.permute.xlu0 0
    %38 = vperm.xlu0 %37, %v32
    %v39 = vpop.permute.xlu0 %38
    %42 = vset.pattern.permute.xlu0 0
    %43 = vperm.xlu0 %42, %v33
    %v44 = vpop.permute.xlu0 %43
    %47 = vset.pattern.permute.xlu0 0
    %48 = vperm.xlu0 %47, %v34
    %v49 = vpop.permute.xlu0 %48
    %52 = vset.pattern.permute.xlu0 0
    %53 = vperm.xlu0 %52, %v35
    %v54 = vpop.permute.xlu0 %53
    %57 = vst [vmem:[#allocation1] ss:$4 sm:$0xff] %v27
    %v58 = vld.sshfl [vmem:[#allocation1] sm:$0xff pattern:$0x73625140]
    %v59 = vld.sshfl [vmem:[#allocation1 + $0x8] sm:$0xff pattern:$0x73625140]
    %v60 = vld.sshfl [vmem:[#allocation1 + $0x10] sm:$0xff pattern:$0x73625140]
    %v61 = vld.sshfl [vmem:[#allocation1 + $0x18] sm:$0xff pattern:$0x73625140]
    %vm62 = vcmask 15360
    %v64 = vsel %vm62, %v28, 0
    %v67 = vsel %vm62, %v29, 0
    %v70 = vsel %vm62, %v30, 0
    %v73 = vsel %vm62, %v31, 0
    %vm75 = vcmask 1041408
    %v76 = vsel %vm75, %v58, 0
    %v78 = vsel %vm75, %v59, 0
    %v80 = vsel %vm75, %v60, 0
    %v82 = vsel %vm75, %v61, 0
    %84 = vmatpush.msra.mxu0 0.0
    %85 = vmatpush.msra.mxu0 0.0
    %86 = vmatpush.msra.mxu0 0.0
    %87 = vmatpush.msra.mxu0 0.0
    %88 = vmatpush.msra.mxu0 0.0
    %89 = vmatpush.msra.mxu0 0.0
    %90 = vmatpush.msra.mxu0 0.0
    %91 = vmatpush.msra.mxu0 0.0
    %92 = vmatpush.msra.mxu0 0.0
    %93 = vmatpush.msra.mxu0 0.0
    %94 = vmatpush.msra.mxu0 0.0
    %95 = vmatpush.msra.mxu0 0.0
    %96 = vmatpush.msra.mxu0 0.0
    %97 = vmatpush.msra.mxu0 0.0
    %98 = vmatpush.msra.mxu0 0.0
    %v99 = vand.u32 %v76, 4294901760
    %100 = vmatpush.msra.mxu0 %v99
    %v101 = vand.u32 %v64, 4294901760
    %v102 = vsub.f32 %v64, %v101
    %v103 = vand.u32 %v102, 4294901760
    %v104 = vsub.f32 %v102, %v103
    %v105 = vand.u32 %v104, 4294901760
    %106 = vmatmul.f32.gmra.mxu0 %v105
    %v107 = vpop.f32.mrf.mxu0
    %v108 = vadd.f32 %v39, %v107
    %v109 = vand.u32 %v67, 4294901760
    %v110 = vsub.f32 %v67, %v109
    %v111 = vand.u32 %v110, 4294901760
    %v112 = vsub.f32 %v110, %v111
    %v113 = vand.u32 %v112, 4294901760
    %114 = vmatmul.f32.gmra.mxu0 %v113
    %v115 = vpop.f32.mrf.mxu0
    %v116 = vadd.f32 %v44, %v115
    %v117 = vand.u32 %v70, 4294901760
    %v118 = vsub.f32 %v70, %v117
    %v119 = vand.u32 %v118, 4294901760
    %v120 = vsub.f32 %v118, %v119
    %v121 = vand.u32 %v120, 4294901760
    %122 = vmatmul.f32.gmra.mxu0 %v121
    %v123 = vpop.f32.mrf.mxu0
    %v124 = vadd.f32 %v49, %v123
    %v125 = vand.u32 %v73, 4294901760
    %v126 = vsub.f32 %v73, %v125
    %v127 = vand.u32 %v126, 4294901760
    %v128 = vsub.f32 %v126, %v127
    %v129 = vand.u32 %v128, 4294901760
    %130 = vmatmul.f32.gmra.mxu0 %v129
    %v131 = vpop.f32.mrf.mxu0
    %v132 = vadd.f32 %v54, %v131
    %133 = vdwg.mxu0
    %134 = vmatpush.msra.mxu0 0.0
    %135 = vmatpush.msra.mxu0 0.0
    %136 = vmatpush.msra.mxu0 0.0
    %137 = vmatpush.msra.mxu0 0.0
    %138 = vmatpush.msra.mxu0 0.0
    %139 = vmatpush.msra.mxu0 0.0
    %140 = vmatpush.msra.mxu0 0.0
    %141 = vmatpush.msra.mxu0 0.0
    %142 = vmatpush.msra.mxu0 0.0
    %143 = vmatpush.msra.mxu0 0.0
    %144 = vmatpush.msra.mxu0 0.0
    %145 = vmatpush.msra.mxu0 0.0
    %146 = vmatpush.msra.mxu0 0.0
    %147 = vmatpush.msra.mxu0 0.0
    %148 = vmatpush.msra.mxu0 0.0
    %v149 = vand.u32 %v76, 4294901760
    %v150 = vsub.f32 %v76, %v149
    %v151 = vand.u32 %v150, 4294901760
    %v152 = vsub.f32 %v150, %v151
    %v153 = vand.u32 %v152, 4294901760
    %154 = vmatpush.msra.mxu0 %v153
    %v155 = vand.u32 %v64, 4294901760
    %156 = vmatmul.f32.gmra.mxu0 %v155
    %v157 = vpop.f32.mrf.mxu0
    %v158 = vadd.f32 %v108, %v157
    %v159 = vand.u32 %v67, 4294901760
    %160 = vmatmul.f32.gmra.mxu0 %v159
    %v161 = vpop.f32.mrf.mxu0
    %v162 = vadd.f32 %v116, %v161
    %v163 = vand.u32 %v70, 4294901760
    %164 = vmatmul.f32.gmra.mxu0 %v163
    %v165 = vpop.f32.mrf.mxu0
    %v166 = vadd.f32 %v124, %v165
    %v167 = vand.u32 %v73, 4294901760
    %168 = vmatmul.f32.gmra.mxu0 %v167
    %v169 = vpop.f32.mrf.mxu0
    %v170 = vadd.f32 %v132, %v169
    %171 = vdwg.mxu0
    %172 = vmatpush.msra.mxu0 0.0
    %173 = vmatpush.msra.mxu0 0.0
    %174 = vmatpush.msra.mxu0 0.0
    %175 = vmatpush.msra.mxu0 0.0
    %176 = vmatpush.msra.mxu0 0.0
    %177 = vmatpush.msra.mxu0 0.0
    %178 = vmatpush.msra.mxu0 0.0
    %179 = vmatpush.msra.mxu0 0.0
    %180 = vmatpush.msra.mxu0 0.0
    %181 = vmatpush.msra.mxu0 0.0
    %182 = vmatpush.msra.mxu0 0.0
    %183 = vmatpush.msra.mxu0 0.0
    %184 = vmatpush.msra.mxu0 0.0
    %185 = vmatpush.msra.mxu0 0.0
    %186 = vmatpush.msra.mxu0 0.0
    %v187 = vand.u32 %v76, 4294901760
    %v188 = vsub.f32 %v76, %v187
    %189 = vmatpush.msra.mxu0 %v188
    %v190 = vand.u32 %v64, 4294901760
    %v191 = vsub.f32 %v64, %v190
    %192 = vmatmul.f32.gmra.mxu0 %v191
    %v193 = vpop.f32.mrf.mxu0
    %v194 = vadd.f32 %v158, %v193
    %v195 = vand.u32 %v67, 4294901760
    %v196 = vsub.f32 %v67, %v195
    %197 = vmatmul.f32.gmra.mxu0 %v196
    %v198 = vpop.f32.mrf.mxu0
    %v199 = vadd.f32 %v162, %v198
    %v200 = vand.u32 %v70, 4294901760
    %v201 = vsub.f32 %v70, %v200
    %202 = vmatmul.f32.gmra.mxu0 %v201
    %v203 = vpop.f32.mrf.mxu0
    %v204 = vadd.f32 %v166, %v203
    %v205 = vand.u32 %v73, 4294901760
    %v206 = vsub.f32 %v73, %v205
    %207 = vmatmul.f32.gmra.mxu0 %v206
    %v208 = vpop.f32.mrf.mxu0
    %v209 = vadd.f32 %v170, %v208
    %210 = vdwg.mxu0
    %211 = vmatpush.msra.mxu0 0.0
    %212 = vmatpush.msra.mxu0 0.0
    %213 = vmatpush.msra.mxu0 0.0
    %214 = vmatpush.msra.mxu0 0.0
    %215 = vmatpush.msra.mxu0 0.0
    %216 = vmatpush.msra.mxu0 0.0
    %217 = vmatpush.msra.mxu0 0.0
    %218 = vmatpush.msra.mxu0 0.0
    %219 = vmatpush.msra.mxu0 0.0
    %220 = vmatpush.msra.mxu0 0.0
    %221 = vmatpush.msra.mxu0 0.0
    %222 = vmatpush.msra.mxu0 0.0
    %223 = vmatpush.msra.mxu0 0.0
    %224 = vmatpush.msra.mxu0 0.0
    %225 = vmatpush.msra.mxu0 0.0
    %v226 = vand.u32 %v76, 4294901760
    %227 = vmatpush.msra.mxu0 %v226
    %v228 = vand.u32 %v64, 4294901760
    %v229 = vsub.f32 %v64, %v228
    %v230 = vand.u32 %v229, 4294901760
    %231 = vmatmul.f32.gmra.mxu0 %v230
    %v232 = vpop.f32.mrf.mxu0
    %v233 = vadd.f32 %v194, %v232
    %v234 = vand.u32 %v67, 4294901760
    %v235 = vsub.f32 %v67, %v234
    %v236 = vand.u32 %v235, 4294901760
    %237 = vmatmul.f32.gmra.mxu0 %v236
    %v238 = vpop.f32.mrf.mxu0
    %v239 = vadd.f32 %v199, %v238
    %v240 = vand.u32 %v70, 4294901760
    %v241 = vsub.f32 %v70, %v240
    %v242 = vand.u32 %v241, 4294901760
    %243 = vmatmul.f32.gmra.mxu0 %v242
    %v244 = vpop.f32.mrf.mxu0
    %v245 = vadd.f32 %v204, %v244
    %v246 = vand.u32 %v73, 4294901760
    %v247 = vsub.f32 %v73, %v246
    %v248 = vand.u32 %v247, 4294901760
    %249 = vmatmul.f32.gmra.mxu0 %v248
    %v250 = vpop.f32.mrf.mxu0
    %v251 = vadd.f32 %v209, %v250
    %252 = vdwg.mxu0
    %253 = vmatpush.msra.mxu0 0.0
    %254 = vmatpush.msra.mxu0 0.0
    %255 = vmatpush.msra.mxu0 0.0
    %256 = vmatpush.msra.mxu0 0.0
    %257 = vmatpush.msra.mxu0 0.0
    %258 = vmatpush.msra.mxu0 0.0
    %259 = vmatpush.msra.mxu0 0.0
    %260 = vmatpush.msra.mxu0 0.0
    %261 = vmatpush.msra.mxu0 0.0
    %262 = vmatpush.msra.mxu0 0.0
    %263 = vmatpush.msra.mxu0 0.0
    %264 = vmatpush.msra.mxu0 0.0
    %265 = vmatpush.msra.mxu0 0.0
    %266 = vmatpush.msra.mxu0 0.0
    %267 = vmatpush.msra.mxu0 0.0
    %v268 = vand.u32 %v76, 4294901760
    %v269 = vsub.f32 %v76, %v268
    %v270 = vand.u32 %v269, 4294901760
    %271 = vmatpush.msra.mxu0 %v270
    %v272 = vand.u32 %v64, 4294901760
    %273 = vmatmul.f32.gmra.mxu0 %v272
    %v274 = vpop.f32.mrf.mxu0
    %v275 = vadd.f32 %v233, %v274
    %v276 = vand.u32 %v67, 4294901760
    %277 = vmatmul.f32.gmra.mxu0 %v276
    %v278 = vpop.f32.mrf.mxu0
    %v279 = vadd.f32 %v239, %v278
    %v280 = vand.u32 %v70, 4294901760
    %281 = vmatmul.f32.gmra.mxu0 %v280
    %v282 = vpop.f32.mrf.mxu0
    %v283 = vadd.f32 %v245, %v282
    %v284 = vand.u32 %v73, 4294901760
    %285 = vmatmul.f32.gmra.mxu0 %v284
    %v286 = vpop.f32.mrf.mxu0
    %v287 = vadd.f32 %v251, %v286
    %288 = vdwg.mxu0
    %289 = vmatpush.msra.mxu0 0.0
    %290 = vmatpush.msra.mxu0 0.0
    %291 = vmatpush.msra.mxu0 0.0
    %292 = vmatpush.msra.mxu0 0.0
    %293 = vmatpush.msra.mxu0 0.0
    %294 = vmatpush.msra.mxu0 0.0
    %295 = vmatpush.msra.mxu0 0.0
    %296 = vmatpush.msra.mxu0 0.0
    %297 = vmatpush.msra.mxu0 0.0
    %298 = vmatpush.msra.mxu0 0.0
    %299 = vmatpush.msra.mxu0 0.0
    %300 = vmatpush.msra.mxu0 0.0
    %301 = vmatpush.msra.mxu0 0.0
    %302 = vmatpush.msra.mxu0 0.0
    %303 = vmatpush.msra.mxu0 0.0
    %v304 = vand.u32 %v76, 4294901760
    %305 = vmatpush.msra.mxu0 %v304
    %v306 = vand.u32 %v64, 4294901760
    %307 = vmatmul.f32.gmra.mxu0 %v306
    %v308 = vpop.f32.mrf.mxu0
    %v309 = vadd.f32 %v275, %v308
    %v310 = vand.u32 %v67, 4294901760
    %311 = vmatmul.f32.gmra.mxu0 %v310
    %v312 = vpop.f32.mrf.mxu0
    %v313 = vadd.f32 %v279, %v312
    %v314 = vand.u32 %v70, 4294901760
    %315 = vmatmul.f32.gmra.mxu0 %v314
    %v316 = vpop.f32.mrf.mxu0
    %v317 = vadd.f32 %v283, %v316
    %v318 = vand.u32 %v73, 4294901760
    %319 = vmatmul.f32.gmra.mxu0 %v318
    %v320 = vpop.f32.mrf.mxu0
    %v321 = vadd.f32 %v287, %v320
    %322 = vdwg.mxu0
    %323 = vmatpush.msra.mxu0 0.0
    %324 = vmatpush.msra.mxu0 0.0
    %325 = vmatpush.msra.mxu0 0.0
    %326 = vmatpush.msra.mxu0 0.0
    %327 = vmatpush.msra.mxu0 0.0
    %328 = vmatpush.msra.mxu0 0.0
    %329 = vmatpush.msra.mxu0 0.0
    %330 = vmatpush.msra.mxu0 0.0
    %331 = vmatpush.msra.mxu0 0.0
    %332 = vmatpush.msra.mxu0 0.0
    %333 = vmatpush.msra.mxu0 0.0
    %334 = vmatpush.msra.mxu0 0.0
    %335 = vmatpush.msra.mxu0 0.0
    %336 = vmatpush.msra.mxu0 0.0
    %337 = vmatpush.msra.mxu0 0.0
    %v338 = vand.u32 %v78, 4294901760
    %339 = vmatpush.msra.mxu0 %v338
    %v340 = vand.u32 %v64, 4294901760
    %v341 = vsub.f32 %v64, %v340
    %v342 = vand.u32 %v341, 4294901760
    %v343 = vsub.f32 %v341, %v342
    %v344 = vand.u32 %v343, 4294901760
    %345 = vmatmul.f32.gmra.mxu0 %v344
    %v346 = vpop.f32.mrf.mxu0
    %v347 = vadd.f32 %v39, %v346
    %v348 = vand.u32 %v67, 4294901760
    %v349 = vsub.f32 %v67, %v348
    %v350 = vand.u32 %v349, 4294901760
    %v351 = vsub.f32 %v349, %v350
    %v352 = vand.u32 %v351, 4294901760
    %353 = vmatmul.f32.gmra.mxu0 %v352
    %v354 = vpop.f32.mrf.mxu0
    %v355 = vadd.f32 %v44, %v354
    %v356 = vand.u32 %v70, 4294901760
    %v357 = vsub.f32 %v70, %v356
    %v358 = vand.u32 %v357, 4294901760
    %v359 = vsub.f32 %v357, %v358
    %v360 = vand.u32 %v359, 4294901760
    %361 = vmatmul.f32.gmra.mxu0 %v360
    %v362 = vpop.f32.mrf.mxu0
    %v363 = vadd.f32 %v49, %v362
    %v364 = vand.u32 %v73, 4294901760
    %v365 = vsub.f32 %v73, %v364
    %v366 = vand.u32 %v365, 4294901760
    %v367 = vsub.f32 %v365, %v366
    %v368 = vand.u32 %v367, 4294901760
    %369 = vmatmul.f32.gmra.mxu0 %v368
    %v370 = vpop.f32.mrf.mxu0
    %v371 = vadd.f32 %v54, %v370
    %372 = vdwg.mxu0
    %373 = vmatpush.msra.mxu0 0.0
    %374 = vmatpush.msra.mxu0 0.0
    %375 = vmatpush.msra.mxu0 0.0
    %376 = vmatpush.msra.mxu0 0.0
    %377 = vmatpush.msra.mxu0 0.0
    %378 = vmatpush.msra.mxu0 0.0
    %379 = vmatpush.msra.mxu0 0.0
    %380 = vmatpush.msra.mxu0 0.0
    %381 = vmatpush.msra.mxu0 0.0
    %382 = vmatpush.msra.mxu0 0.0
    %383 = vmatpush.msra.mxu0 0.0
    %384 = vmatpush.msra.mxu0 0.0
    %385 = vmatpush.msra.mxu0 0.0
    %386 = vmatpush.msra.mxu0 0.0
    %387 = vmatpush.msra.mxu0 0.0
    %v388 = vand.u32 %v78, 4294901760
    %v389 = vsub.f32 %v78, %v388
    %v390 = vand.u32 %v389, 4294901760
    %v391 = vsub.f32 %v389, %v390
    %v392 = vand.u32 %v391, 4294901760
    %393 = vmatpush.msra.mxu0 %v392
    %v394 = vand.u32 %v64, 4294901760
    %395 = vmatmul.f32.gmra.mxu0 %v394
    %v396 = vpop.f32.mrf.mxu0
    %v397 = vadd.f32 %v347, %v396
    %v398 = vand.u32 %v67, 4294901760
    %399 = vmatmul.f32.gmra.mxu0 %v398
    %v400 = vpop.f32.mrf.mxu0
    %v401 = vadd.f32 %v355, %v400
    %v402 = vand.u32 %v70, 4294901760
    %403 = vmatmul.f32.gmra.mxu0 %v402
    %v404 = vpop.f32.mrf.mxu0
    %v405 = vadd.f32 %v363, %v404
    %v406 = vand.u32 %v73, 4294901760
    %407 = vmatmul.f32.gmra.mxu0 %v406
    %v408 = vpop.f32.mrf.mxu0
    %v409 = vadd.f32 %v371, %v408
    %410 = vdwg.mxu0
    %411 = vmatpush.msra.mxu0 0.0
    %412 = vmatpush.msra.mxu0 0.0
    %413 = vmatpush.msra.mxu0 0.0
    %414 = vmatpush.msra.mxu0 0.0
    %415 = vmatpush.msra.mxu0 0.0
    %416 = vmatpush.msra.mxu0 0.0
    %417 = vmatpush.msra.mxu0 0.0
    %418 = vmatpush.msra.mxu0 0.0
    %419 = vmatpush.msra.mxu0 0.0
    %420 = vmatpush.msra.mxu0 0.0
    %421 = vmatpush.msra.mxu0 0.0
    %422 = vmatpush.msra.mxu0 0.0
    %423 = vmatpush.msra.mxu0 0.0
    %424 = vmatpush.msra.mxu0 0.0
    %425 = vmatpush.msra.mxu0 0.0
    %v426 = vand.u32 %v78, 4294901760
    %v427 = vsub.f32 %v78, %v426
    %428 = vmatpush.msra.mxu0 %v427
    %v429 = vand.u32 %v64, 4294901760
    %v430 = vsub.f32 %v64, %v429
    %431 = vmatmul.f32.gmra.mxu0 %v430
    %v432 = vpop.f32.mrf.mxu0
    %v433 = vadd.f32 %v397, %v432
    %v434 = vand.u32 %v67, 4294901760
    %v435 = vsub.f32 %v67, %v434
    %436 = vmatmul.f32.gmra.mxu0 %v435
    %v437 = vpop.f32.mrf.mxu0
    %v438 = vadd.f32 %v401, %v437
    %v439 = vand.u32 %v70, 4294901760
    %v440 = vsub.f32 %v70, %v439
    %441 = vmatmul.f32.gmra.mxu0 %v440
    %v442 = vpop.f32.mrf.mxu0
    %v443 = vadd.f32 %v405, %v442
    %v444 = vand.u32 %v73, 4294901760
    %v445 = vsub.f32 %v73, %v444
    %446 = vmatmul.f32.gmra.mxu0 %v445
    %v447 = vpop.f32.mrf.mxu0
    %v448 = vadd.f32 %v409, %v447
    %449 = vdwg.mxu0
    %450 = vmatpush.msra.mxu0 0.0
    %451 = vmatpush.msra.mxu0 0.0
    %452 = vmatpush.msra.mxu0 0.0
    %453 = vmatpush.msra.mxu0 0.0
    %454 = vmatpush.msra.mxu0 0.0
    %455 = vmatpush.msra.mxu0 0.0
    %456 = vmatpush.msra.mxu0 0.0
    %457 = vmatpush.msra.mxu0 0.0
    %458 = vmatpush.msra.mxu0 0.0
    %459 = vmatpush.msra.mxu0 0.0
    %460 = vmatpush.msra.mxu0 0.0
    %461 = vmatpush.msra.mxu0 0.0
    %462 = vmatpush.msra.mxu0 0.0
    %463 = vmatpush.msra.mxu0 0.0
    %464 = vmatpush.msra.mxu0 0.0
    %v465 = vand.u32 %v78, 4294901760
    %466 = vmatpush.msra.mxu0 %v465
    %v467 = vand.u32 %v64, 4294901760
    %v468 = vsub.f32 %v64, %v467
    %v469 = vand.u32 %v468, 4294901760
    %470 = vmatmul.f32.gmra.mxu0 %v469
    %v471 = vpop.f32.mrf.mxu0
    %v472 = vadd.f32 %v433, %v471
    %v473 = vand.u32 %v67, 4294901760
    %v474 = vsub.f32 %v67, %v473
    %v475 = vand.u32 %v474, 4294901760
    %476 = vmatmul.f32.gmra.mxu0 %v475
    %v477 = vpop.f32.mrf.mxu0
    %v478 = vadd.f32 %v438, %v477
    %v479 = vand.u32 %v70, 4294901760
    %v480 = vsub.f32 %v70, %v479
    %v481 = vand.u32 %v480, 4294901760
    %482 = vmatmul.f32.gmra.mxu0 %v481
    %v483 = vpop.f32.mrf.mxu0
    %v484 = vadd.f32 %v443, %v483
    %v485 = vand.u32 %v73, 4294901760
    %v486 = vsub.f32 %v73, %v485
    %v487 = vand.u32 %v486, 4294901760
    %488 = vmatmul.f32.gmra.mxu0 %v487
    %v489 = vpop.f32.mrf.mxu0
    %v490 = vadd.f32 %v448, %v489
    %491 = vdwg.mxu0
    %492 = vmatpush.msra.mxu0 0.0
    %493 = vmatpush.msra.mxu0 0.0
    %494 = vmatpush.msra.mxu0 0.0
    %495 = vmatpush.msra.mxu0 0.0
    %496 = vmatpush.msra.mxu0 0.0
    %497 = vmatpush.msra.mxu0 0.0
    %498 = vmatpush.msra.mxu0 0.0
    %499 = vmatpush.msra.mxu0 0.0
    %500 = vmatpush.msra.mxu0 0.0
    %501 = vmatpush.msra.mxu0 0.0
    %502 = vmatpush.msra.mxu0 0.0
    %503 = vmatpush.msra.mxu0 0.0
    %504 = vmatpush.msra.mxu0 0.0
    %505 = vmatpush.msra.mxu0 0.0
    %506 = vmatpush.msra.mxu0 0.0
    %v507 = vand.u32 %v78, 4294901760
    %v508 = vsub.f32 %v78, %v507
    %v509 = vand.u32 %v508, 4294901760
    %510 = vmatpush.msra.mxu0 %v509
    %v511 = vand.u32 %v64, 4294901760
    %512 = vmatmul.f32.gmra.mxu0 %v511
    %v513 = vpop.f32.mrf.mxu0
    %v514 = vadd.f32 %v472, %v513
    %v515 = vand.u32 %v67, 4294901760
    %516 = vmatmul.f32.gmra.mxu0 %v515
    %v517 = vpop.f32.mrf.mxu0
    %v518 = vadd.f32 %v478, %v517
    %v519 = vand.u32 %v70, 4294901760
    %520 = vmatmul.f32.gmra.mxu0 %v519
    %v521 = vpop.f32.mrf.mxu0
    %v522 = vadd.f32 %v484, %v521
    %v523 = vand.u32 %v73, 4294901760
    %524 = vmatmul.f32.gmra.mxu0 %v523
    %v525 = vpop.f32.mrf.mxu0
    %v526 = vadd.f32 %v490, %v525
    %527 = vdwg.mxu0
    %528 = vmatpush.msra.mxu0 0.0
    %529 = vmatpush.msra.mxu0 0.0
    %530 = vmatpush.msra.mxu0 0.0
    %531 = vmatpush.msra.mxu0 0.0
    %532 = vmatpush.msra.mxu0 0.0
    %533 = vmatpush.msra.mxu0 0.0
    %534 = vmatpush.msra.mxu0 0.0
    %535 = vmatpush.msra.mxu0 0.0
    %536 = vmatpush.msra.mxu0 0.0
    %537 = vmatpush.msra.mxu0 0.0
    %538 = vmatpush.msra.mxu0 0.0
    %539 = vmatpush.msra.mxu0 0.0
    %540 = vmatpush.msra.mxu0 0.0
    %541 = vmatpush.msra.mxu0 0.0
    %542 = vmatpush.msra.mxu0 0.0
    %v543 = vand.u32 %v78, 4294901760
    %544 = vmatpush.msra.mxu0 %v543
    %v545 = vand.u32 %v64, 4294901760
    %546 = vmatmul.f32.gmra.mxu0 %v545
    %v547 = vpop.f32.mrf.mxu0
    %v548 = vadd.f32 %v514, %v547
    %v549 = vand.u32 %v67, 4294901760
    %550 = vmatmul.f32.gmra.mxu0 %v549
    %v551 = vpop.f32.mrf.mxu0
    %v552 = vadd.f32 %v518, %v551
    %v553 = vand.u32 %v70, 4294901760
    %554 = vmatmul.f32.gmra.mxu0 %v553
    %v555 = vpop.f32.mrf.mxu0
    %v556 = vadd.f32 %v522, %v555
    %v557 = vand.u32 %v73, 4294901760
    %558 = vmatmul.f32.gmra.mxu0 %v557
    %v559 = vpop.f32.mrf.mxu0
    %v560 = vadd.f32 %v526, %v559
    %561 = vdwg.mxu0
    %562 = vmatpush.msra.mxu0 0.0
    %563 = vmatpush.msra.mxu0 0.0
    %564 = vmatpush.msra.mxu0 0.0
    %565 = vmatpush.msra.mxu0 0.0
    %566 = vmatpush.msra.mxu0 0.0
    %567 = vmatpush.msra.mxu0 0.0
    %568 = vmatpush.msra.mxu0 0.0
    %569 = vmatpush.msra.mxu0 0.0
    %570 = vmatpush.msra.mxu0 0.0
    %571 = vmatpush.msra.mxu0 0.0
    %572 = vmatpush.msra.mxu0 0.0
    %573 = vmatpush.msra.mxu0 0.0
    %574 = vmatpush.msra.mxu0 0.0
    %575 = vmatpush.msra.mxu0 0.0
    %576 = vmatpush.msra.mxu0 0.0
    %v577 = vand.u32 %v80, 4294901760
    %578 = vmatpush.msra.mxu0 %v577
    %v579 = vand.u32 %v64, 4294901760
    %v580 = vsub.f32 %v64, %v579
    %v581 = vand.u32 %v580, 4294901760
    %v582 = vsub.f32 %v580, %v581
    %v583 = vand.u32 %v582, 4294901760
    %584 = vmatmul.f32.gmra.mxu0 %v583
    %v585 = vpop.f32.mrf.mxu0
    %v586 = vadd.f32 %v39, %v585
    %v587 = vand.u32 %v67, 4294901760
    %v588 = vsub.f32 %v67, %v587
    %v589 = vand.u32 %v588, 4294901760
    %v590 = vsub.f32 %v588, %v589
    %v591 = vand.u32 %v590, 4294901760
    %592 = vmatmul.f32.gmra.mxu0 %v591
    %v593 = vpop.f32.mrf.mxu0
    %v594 = vadd.f32 %v44, %v593
    %v595 = vand.u32 %v70, 4294901760
    %v596 = vsub.f32 %v70, %v595
    %v597 = vand.u32 %v596, 4294901760
    %v598 = vsub.f32 %v596, %v597
    %v599 = vand.u32 %v598, 4294901760
    %600 = vmatmul.f32.gmra.mxu0 %v599
    %v601 = vpop.f32.mrf.mxu0
    %v602 = vadd.f32 %v49, %v601
    %v603 = vand.u32 %v73, 4294901760
    %v604 = vsub.f32 %v73, %v603
    %v605 = vand.u32 %v604, 4294901760
    %v606 = vsub.f32 %v604, %v605
    %v607 = vand.u32 %v606, 4294901760
    %608 = vmatmul.f32.gmra.mxu0 %v607
    %v609 = vpop.f32.mrf.mxu0
    %v610 = vadd.f32 %v54, %v609
    %611 = vdwg.mxu0
    %612 = vmatpush.msra.mxu0 0.0
    %613 = vmatpush.msra.mxu0 0.0
    %614 = vmatpush.msra.mxu0 0.0
    %615 = vmatpush.msra.mxu0 0.0
    %616 = vmatpush.msra.mxu0 0.0
    %617 = vmatpush.msra.mxu0 0.0
    %618 = vmatpush.msra.mxu0 0.0
    %619 = vmatpush.msra.mxu0 0.0
    %620 = vmatpush.msra.mxu0 0.0
    %621 = vmatpush.msra.mxu0 0.0
    %622 = vmatpush.msra.mxu0 0.0
    %623 = vmatpush.msra.mxu0 0.0
    %624 = vmatpush.msra.mxu0 0.0
    %625 = vmatpush.msra.mxu0 0.0
    %626 = vmatpush.msra.mxu0 0.0
    %v627 = vand.u32 %v80, 4294901760
    %v628 = vsub.f32 %v80, %v627
    %v629 = vand.u32 %v628, 4294901760
    %v630 = vsub.f32 %v628, %v629
    %v631 = vand.u32 %v630, 4294901760
    %632 = vmatpush.msra.mxu0 %v631
    %v633 = vand.u32 %v64, 4294901760
    %634 = vmatmul.f32.gmra.mxu0 %v633
    %v635 = vpop.f32.mrf.mxu0
    %v636 = vadd.f32 %v586, %v635
    %v637 = vand.u32 %v67, 4294901760
    %638 = vmatmul.f32.gmra.mxu0 %v637
    %v639 = vpop.f32.mrf.mxu0
    %v640 = vadd.f32 %v594, %v639
    %v641 = vand.u32 %v70, 4294901760
    %642 = vmatmul.f32.gmra.mxu0 %v641
    %v643 = vpop.f32.mrf.mxu0
    %v644 = vadd.f32 %v602, %v643
    %v645 = vand.u32 %v73, 4294901760
    %646 = vmatmul.f32.gmra.mxu0 %v645
    %v647 = vpop.f32.mrf.mxu0
    %v648 = vadd.f32 %v610, %v647
    %649 = vdwg.mxu0
    %650 = vmatpush.msra.mxu0 0.0
    %651 = vmatpush.msra.mxu0 0.0
    %652 = vmatpush.msra.mxu0 0.0
    %653 = vmatpush.msra.mxu0 0.0
    %654 = vmatpush.msra.mxu0 0.0
    %655 = vmatpush.msra.mxu0 0.0
    %656 = vmatpush.msra.mxu0 0.0
    %657 = vmatpush.msra.mxu0 0.0
    %658 = vmatpush.msra.mxu0 0.0
    %659 = vmatpush.msra.mxu0 0.0
    %660 = vmatpush.msra.mxu0 0.0
    %661 = vmatpush.msra.mxu0 0.0
    %662 = vmatpush.msra.mxu0 0.0
    %663 = vmatpush.msra.mxu0 0.0
    %664 = vmatpush.msra.mxu0 0.0
    %v665 = vand.u32 %v80, 4294901760
    %v666 = vsub.f32 %v80, %v665
    %667 = vmatpush.msra.mxu0 %v666
    %v668 = vand.u32 %v64, 4294901760
    %v669 = vsub.f32 %v64, %v668
    %670 = vmatmul.f32.gmra.mxu0 %v669
    %v671 = vpop.f32.mrf.mxu0
    %v672 = vadd.f32 %v636, %v671
    %v673 = vand.u32 %v67, 4294901760
    %v674 = vsub.f32 %v67, %v673
    %675 = vmatmul.f32.gmra.mxu0 %v674
    %v676 = vpop.f32.mrf.mxu0
    %v677 = vadd.f32 %v640, %v676
    %v678 = vand.u32 %v70, 4294901760
    %v679 = vsub.f32 %v70, %v678
    %680 = vmatmul.f32.gmra.mxu0 %v679
    %v681 = vpop.f32.mrf.mxu0
    %v682 = vadd.f32 %v644, %v681
    %v683 = vand.u32 %v73, 4294901760
    %v684 = vsub.f32 %v73, %v683
    %685 = vmatmul.f32.gmra.mxu0 %v684
    %v686 = vpop.f32.mrf.mxu0
    %v687 = vadd.f32 %v648, %v686
    %688 = vdwg.mxu0
    %689 = vmatpush.msra.mxu0 0.0
    %690 = vmatpush.msra.mxu0 0.0
    %691 = vmatpush.msra.mxu0 0.0
    %692 = vmatpush.msra.mxu0 0.0
    %693 = vmatpush.msra.mxu0 0.0
    %694 = vmatpush.msra.mxu0 0.0
    %695 = vmatpush.msra.mxu0 0.0
    %696 = vmatpush.msra.mxu0 0.0
    %697 = vmatpush.msra.mxu0 0.0
    %698 = vmatpush.msra.mxu0 0.0
    %699 = vmatpush.msra.mxu0 0.0
    %700 = vmatpush.msra.mxu0 0.0
    %701 = vmatpush.msra.mxu0 0.0
    %702 = vmatpush.msra.mxu0 0.0
    %703 = vmatpush.msra.mxu0 0.0
    %v704 = vand.u32 %v80, 4294901760
    %705 = vmatpush.msra.mxu0 %v704
    %v706 = vand.u32 %v64, 4294901760
    %v707 = vsub.f32 %v64, %v706
    %v708 = vand.u32 %v707, 4294901760
    %709 = vmatmul.f32.gmra.mxu0 %v708
    %v710 = vpop.f32.mrf.mxu0
    %v711 = vadd.f32 %v672, %v710
    %v712 = vand.u32 %v67, 4294901760
    %v713 = vsub.f32 %v67, %v712
    %v714 = vand.u32 %v713, 4294901760
    %715 = vmatmul.f32.gmra.mxu0 %v714
    %v716 = vpop.f32.mrf.mxu0
    %v717 = vadd.f32 %v677, %v716
    %v718 = vand.u32 %v70, 4294901760
    %v719 = vsub.f32 %v70, %v718
    %v720 = vand.u32 %v719, 4294901760
    %721 = vmatmul.f32.gmra.mxu0 %v720
    %v722 = vpop.f32.mrf.mxu0
    %v723 = vadd.f32 %v682, %v722
    %v724 = vand.u32 %v73, 4294901760
    %v725 = vsub.f32 %v73, %v724
    %v726 = vand.u32 %v725, 4294901760
    %727 = vmatmul.f32.gmra.mxu0 %v726
    %v728 = vpop.f32.mrf.mxu0
    %v729 = vadd.f32 %v687, %v728
    %730 = vdwg.mxu0
    %731 = vmatpush.msra.mxu0 0.0
    %732 = vmatpush.msra.mxu0 0.0
    %733 = vmatpush.msra.mxu0 0.0
    %734 = vmatpush.msra.mxu0 0.0
    %735 = vmatpush.msra.mxu0 0.0
    %736 = vmatpush.msra.mxu0 0.0
    %737 = vmatpush.msra.mxu0 0.0
    %738 = vmatpush.msra.mxu0 0.0
    %739 = vmatpush.msra.mxu0 0.0
    %740 = vmatpush.msra.mxu0 0.0
    %741 = vmatpush.msra.mxu0 0.0
    %742 = vmatpush.msra.mxu0 0.0
    %743 = vmatpush.msra.mxu0 0.0
    %744 = vmatpush.msra.mxu0 0.0
    %745 = vmatpush.msra.mxu0 0.0
    %v746 = vand.u32 %v80, 4294901760
    %v747 = vsub.f32 %v80, %v746
    %v748 = vand.u32 %v747, 4294901760
    %749 = vmatpush.msra.mxu0 %v748
    %v750 = vand.u32 %v64, 4294901760
    %751 = vmatmul.f32.gmra.mxu0 %v750
    %v752 = vpop.f32.mrf.mxu0
    %v753 = vadd.f32 %v711, %v752
    %v754 = vand.u32 %v67, 4294901760
    %755 = vmatmul.f32.gmra.mxu0 %v754
    %v756 = vpop.f32.mrf.mxu0
    %v757 = vadd.f32 %v717, %v756
    %v758 = vand.u32 %v70, 4294901760
    %759 = vmatmul.f32.gmra.mxu0 %v758
    %v760 = vpop.f32.mrf.mxu0
    %v761 = vadd.f32 %v723, %v760
    %v762 = vand.u32 %v73, 4294901760
    %763 = vmatmul.f32.gmra.mxu0 %v762
    %v764 = vpop.f32.mrf.mxu0
    %v765 = vadd.f32 %v729, %v764
    %766 = vdwg.mxu0
    %767 = vmatpush.msra.mxu0 0.0
    %768 = vmatpush.msra.mxu0 0.0
    %769 = vmatpush.msra.mxu0 0.0
    %770 = vmatpush.msra.mxu0 0.0
    %771 = vmatpush.msra.mxu0 0.0
    %772 = vmatpush.msra.mxu0 0.0
    %773 = vmatpush.msra.mxu0 0.0
    %774 = vmatpush.msra.mxu0 0.0
    %775 = vmatpush.msra.mxu0 0.0
    %776 = vmatpush.msra.mxu0 0.0
    %777 = vmatpush.msra.mxu0 0.0
    %778 = vmatpush.msra.mxu0 0.0
    %779 = vmatpush.msra.mxu0 0.0
    %780 = vmatpush.msra.mxu0 0.0
    %781 = vmatpush.msra.mxu0 0.0
    %v782 = vand.u32 %v80, 4294901760
    %783 = vmatpush.msra.mxu0 %v782
    %v784 = vand.u32 %v64, 4294901760
    %785 = vmatmul.f32.gmra.mxu0 %v784
    %v786 = vpop.f32.mrf.mxu0
    %v787 = vadd.f32 %v753, %v786
    %v788 = vand.u32 %v67, 4294901760
    %789 = vmatmul.f32.gmra.mxu0 %v788
    %v790 = vpop.f32.mrf.mxu0
    %v791 = vadd.f32 %v757, %v790
    %v792 = vand.u32 %v70, 4294901760
    %793 = vmatmul.f32.gmra.mxu0 %v792
    %v794 = vpop.f32.mrf.mxu0
    %v795 = vadd.f32 %v761, %v794
    %v796 = vand.u32 %v73, 4294901760
    %797 = vmatmul.f32.gmra.mxu0 %v796
    %v798 = vpop.f32.mrf.mxu0
    %v799 = vadd.f32 %v765, %v798
    %800 = vdwg.mxu0
    %801 = vmatpush.msra.mxu0 0.0
    %802 = vmatpush.msra.mxu0 0.0
    %803 = vmatpush.msra.mxu0 0.0
    %804 = vmatpush.msra.mxu0 0.0
    %805 = vmatpush.msra.mxu0 0.0
    %806 = vmatpush.msra.mxu0 0.0
    %807 = vmatpush.msra.mxu0 0.0
    %808 = vmatpush.msra.mxu0 0.0
    %809 = vmatpush.msra.mxu0 0.0
    %810 = vmatpush.msra.mxu0 0.0
    %811 = vmatpush.msra.mxu0 0.0
    %812 = vmatpush.msra.mxu0 0.0
    %813 = vmatpush.msra.mxu0 0.0
    %814 = vmatpush.msra.mxu0 0.0
    %815 = vmatpush.msra.mxu0 0.0
    %v816 = vand.u32 %v82, 4294901760
    %817 = vmatpush.msra.mxu0 %v816
    %v818 = vand.u32 %v64, 4294901760
    %v819 = vsub.f32 %v64, %v818
    %v820 = vand.u32 %v819, 4294901760
    %v821 = vsub.f32 %v819, %v820
    %v822 = vand.u32 %v821, 4294901760
    %823 = vmatmul.f32.gmra.mxu0 %v822
    %v824 = vpop.f32.mrf.mxu0
    %v825 = vadd.f32 %v39, %v824
    %v826 = vand.u32 %v67, 4294901760
    %v827 = vsub.f32 %v67, %v826
    %v828 = vand.u32 %v827, 4294901760
    %v829 = vsub.f32 %v827, %v828
    %v830 = vand.u32 %v829, 4294901760
    %831 = vmatmul.f32.gmra.mxu0 %v830
    %v832 = vpop.f32.mrf.mxu0
    %v833 = vadd.f32 %v44, %v832
    %v834 = vand.u32 %v70, 4294901760
    %v835 = vsub.f32 %v70, %v834
    %v836 = vand.u32 %v835, 4294901760
    %v837 = vsub.f32 %v835, %v836
    %v838 = vand.u32 %v837, 4294901760
    %839 = vmatmul.f32.gmra.mxu0 %v838
    %v840 = vpop.f32.mrf.mxu0
    %v841 = vadd.f32 %v49, %v840
    %v842 = vand.u32 %v73, 4294901760
    %v843 = vsub.f32 %v73, %v842
    %v844 = vand.u32 %v843, 4294901760
    %v845 = vsub.f32 %v843, %v844
    %v846 = vand.u32 %v845, 4294901760
    %847 = vmatmul.f32.gmra.mxu0 %v846
    %v848 = vpop.f32.mrf.mxu0
    %v849 = vadd.f32 %v54, %v848
    %850 = vdwg.mxu0
    %851 = vmatpush.msra.mxu0 0.0
    %852 = vmatpush.msra.mxu0 0.0
    %853 = vmatpush.msra.mxu0 0.0
    %854 = vmatpush.msra.mxu0 0.0
    %855 = vmatpush.msra.mxu0 0.0
    %856 = vmatpush.msra.mxu0 0.0
    %857 = vmatpush.msra.mxu0 0.0
    %858 = vmatpush.msra.mxu0 0.0
    %859 = vmatpush.msra.mxu0 0.0
    %860 = vmatpush.msra.mxu0 0.0
    %861 = vmatpush.msra.mxu0 0.0
    %862 = vmatpush.msra.mxu0 0.0
    %863 = vmatpush.msra.mxu0 0.0
    %864 = vmatpush.msra.mxu0 0.0
    %865 = vmatpush.msra.mxu0 0.0
    %v866 = vand.u32 %v82, 4294901760
    %v867 = vsub.f32 %v82, %v866
    %v868 = vand.u32 %v867, 4294901760
    %v869 = vsub.f32 %v867, %v868
    %v870 = vand.u32 %v869, 4294901760
    %871 = vmatpush.msra.mxu0 %v870
    %v872 = vand.u32 %v64, 4294901760
    %873 = vmatmul.f32.gmra.mxu0 %v872
    %v874 = vpop.f32.mrf.mxu0
    %v875 = vadd.f32 %v825, %v874
    %v876 = vand.u32 %v67, 4294901760
    %877 = vmatmul.f32.gmra.mxu0 %v876
    %v878 = vpop.f32.mrf.mxu0
    %v879 = vadd.f32 %v833, %v878
    %v880 = vand.u32 %v70, 4294901760
    %881 = vmatmul.f32.gmra.mxu0 %v880
    %v882 = vpop.f32.mrf.mxu0
    %v883 = vadd.f32 %v841, %v882
    %v884 = vand.u32 %v73, 4294901760
    %885 = vmatmul.f32.gmra.mxu0 %v884
    %v886 = vpop.f32.mrf.mxu0
    %v887 = vadd.f32 %v849, %v886
    %888 = vdwg.mxu0
    %889 = vmatpush.msra.mxu0 0.0
    %890 = vmatpush.msra.mxu0 0.0
    %891 = vmatpush.msra.mxu0 0.0
    %892 = vmatpush.msra.mxu0 0.0
    %893 = vmatpush.msra.mxu0 0.0
    %894 = vmatpush.msra.mxu0 0.0
    %895 = vmatpush.msra.mxu0 0.0
    %896 = vmatpush.msra.mxu0 0.0
    %897 = vmatpush.msra.mxu0 0.0
    %898 = vmatpush.msra.mxu0 0.0
    %899 = vmatpush.msra.mxu0 0.0
    %900 = vmatpush.msra.mxu0 0.0
    %901 = vmatpush.msra.mxu0 0.0
    %902 = vmatpush.msra.mxu0 0.0
    %903 = vmatpush.msra.mxu0 0.0
    %v904 = vand.u32 %v82, 4294901760
    %v905 = vsub.f32 %v82, %v904
    %906 = vmatpush.msra.mxu0 %v905
    %v907 = vand.u32 %v64, 4294901760
    %v908 = vsub.f32 %v64, %v907
    %909 = vmatmul.f32.gmra.mxu0 %v908
    %v910 = vpop.f32.mrf.mxu0
    %v911 = vadd.f32 %v875, %v910
    %v912 = vand.u32 %v67, 4294901760
    %v913 = vsub.f32 %v67, %v912
    %914 = vmatmul.f32.gmra.mxu0 %v913
    %v915 = vpop.f32.mrf.mxu0
    %v916 = vadd.f32 %v879, %v915
    %v917 = vand.u32 %v70, 4294901760
    %v918 = vsub.f32 %v70, %v917
    %919 = vmatmul.f32.gmra.mxu0 %v918
    %v920 = vpop.f32.mrf.mxu0
    %v921 = vadd.f32 %v883, %v920
    %v922 = vand.u32 %v73, 4294901760
    %v923 = vsub.f32 %v73, %v922
    %924 = vmatmul.f32.gmra.mxu0 %v923
    %v925 = vpop.f32.mrf.mxu0
    %v926 = vadd.f32 %v887, %v925
    %927 = vdwg.mxu0
    %928 = vmatpush.msra.mxu0 0.0
    %929 = vmatpush.msra.mxu0 0.0
    %930 = vmatpush.msra.mxu0 0.0
    %931 = vmatpush.msra.mxu0 0.0
    %932 = vmatpush.msra.mxu0 0.0
    %933 = vmatpush.msra.mxu0 0.0
    %934 = vmatpush.msra.mxu0 0.0
    %935 = vmatpush.msra.mxu0 0.0
    %936 = vmatpush.msra.mxu0 0.0
    %937 = vmatpush.msra.mxu0 0.0
    %938 = vmatpush.msra.mxu0 0.0
    %939 = vmatpush.msra.mxu0 0.0
    %940 = vmatpush.msra.mxu0 0.0
    %941 = vmatpush.msra.mxu0 0.0
    %942 = vmatpush.msra.mxu0 0.0
    %v943 = vand.u32 %v82, 4294901760
    %944 = vmatpush.msra.mxu0 %v943
    %v945 = vand.u32 %v64, 4294901760
    %v946 = vsub.f32 %v64, %v945
    %v947 = vand.u32 %v946, 4294901760
    %948 = vmatmul.f32.gmra.mxu0 %v947
    %v949 = vpop.f32.mrf.mxu0
    %v950 = vadd.f32 %v911, %v949
    %v951 = vand.u32 %v67, 4294901760
    %v952 = vsub.f32 %v67, %v951
    %v953 = vand.u32 %v952, 4294901760
    %954 = vmatmul.f32.gmra.mxu0 %v953
    %v955 = vpop.f32.mrf.mxu0
    %v956 = vadd.f32 %v916, %v955
    %v957 = vand.u32 %v70, 4294901760
    %v958 = vsub.f32 %v70, %v957
    %v959 = vand.u32 %v958, 4294901760
    %960 = vmatmul.f32.gmra.mxu0 %v959
    %v961 = vpop.f32.mrf.mxu0
    %v962 = vadd.f32 %v921, %v961
    %v963 = vand.u32 %v73, 4294901760
    %v964 = vsub.f32 %v73, %v963
    %v965 = vand.u32 %v964, 4294901760
    %966 = vmatmul.f32.gmra.mxu0 %v965
    %v967 = vpop.f32.mrf.mxu0
    %v968 = vadd.f32 %v926, %v967
    %969 = vdwg.mxu0
    %970 = vmatpush.msra.mxu0 0.0
    %971 = vmatpush.msra.mxu0 0.0
    %972 = vmatpush.msra.mxu0 0.0
    %973 = vmatpush.msra.mxu0 0.0
    %974 = vmatpush.msra.mxu0 0.0
    %975 = vmatpush.msra.mxu0 0.0
    %976 = vmatpush.msra.mxu0 0.0
    %977 = vmatpush.msra.mxu0 0.0
    %978 = vmatpush.msra.mxu0 0.0
    %979 = vmatpush.msra.mxu0 0.0
    %980 = vmatpush.msra.mxu0 0.0
    %981 = vmatpush.msra.mxu0 0.0
    %982 = vmatpush.msra.mxu0 0.0
    %983 = vmatpush.msra.mxu0 0.0
    %984 = vmatpush.msra.mxu0 0.0
    %v985 = vand.u32 %v82, 4294901760
    %v986 = vsub.f32 %v82, %v985
    %v987 = vand.u32 %v986, 4294901760
    %988 = vmatpush.msra.mxu0 %v987
    %v989 = vand.u32 %v64, 4294901760
    %990 = vmatmul.f32.gmra.mxu0 %v989
    %v991 = vpop.f32.mrf.mxu0
    %v992 = vadd.f32 %v950, %v991
    %v993 = vand.u32 %v67, 4294901760
    %994 = vmatmul.f32.gmra.mxu0 %v993
    %v995 = vpop.f32.mrf.mxu0
    %v996 = vadd.f32 %v956, %v995
    %v997 = vand.u32 %v70, 4294901760
    %998 = vmatmul.f32.gmra.mxu0 %v997
    %v999 = vpop.f32.mrf.mxu0
    %v1000 = vadd.f32 %v962, %v999
    %v1001 = vand.u32 %v73, 4294901760
    %1002 = vmatmul.f32.gmra.mxu0 %v1001
    %v1003 = vpop.f32.mrf.mxu0
    %v1004 = vadd.f32 %v968, %v1003
    %1005 = vdwg.mxu0
    %1006 = vmatpush.msra.mxu0 0.0
    %1007 = vmatpush.msra.mxu0 0.0
    %1008 = vmatpush.msra.mxu0 0.0
    %1009 = vmatpush.msra.mxu0 0.0
    %1010 = vmatpush.msra.mxu0 0.0
    %1011 = vmatpush.msra.mxu0 0.0
    %1012 = vmatpush.msra.mxu0 0.0
    %1013 = vmatpush.msra.mxu0 0.0
    %1014 = vmatpush.msra.mxu0 0.0
    %1015 = vmatpush.msra.mxu0 0.0
    %1016 = vmatpush.msra.mxu0 0.0
    %1017 = vmatpush.msra.mxu0 0.0
    %1018 = vmatpush.msra.mxu0 0.0
    %1019 = vmatpush.msra.mxu0 0.0
    %1020 = vmatpush.msra.mxu0 0.0
    %v1021 = vand.u32 %v82, 4294901760
    %1022 = vmatpush.msra.mxu0 %v1021
    %v1023 = vand.u32 %v64, 4294901760
    %1024 = vmatmul.f32.gmra.mxu0 %v1023
    %v1025 = vpop.f32.mrf.mxu0
    %v1026 = vadd.f32 %v992, %v1025
    %v1027 = vand.u32 %v67, 4294901760
    %1028 = vmatmul.f32.gmra.mxu0 %v1027
    %v1029 = vpop.f32.mrf.mxu0
    %v1030 = vadd.f32 %v996, %v1029
    %v1031 = vand.u32 %v70, 4294901760
    %1032 = vmatmul.f32.gmra.mxu0 %v1031
    %v1033 = vpop.f32.mrf.mxu0
    %v1034 = vadd.f32 %v1000, %v1033
    %v1035 = vand.u32 %v73, 4294901760
    %1036 = vmatmul.f32.gmra.mxu0 %v1035
    %v1037 = vpop.f32.mrf.mxu0
    %v1038 = vadd.f32 %v1004, %v1037
    %1039 = vdwg.mxu0
    %v1040 = vmul.f32 %v309, 0.5
    %v1041 = vmul.f32 %v548, 0.5
    %v1042 = vmul.f32 %v787, 0.5
    %v1043 = vmul.f32 %v1026, 0.5
    %v1044 = vmul.f32 %v313, 0.5
    %v1045 = vmul.f32 %v552, 0.5
    %v1046 = vmul.f32 %v791, 0.5
    %v1047 = vmul.f32 %v1030, 0.5
    %v1048 = vmul.f32 %v317, 0.5
    %v1049 = vmul.f32 %v556, 0.5
    %v1050 = vmul.f32 %v795, 0.5
    %v1051 = vmul.f32 %v1034, 0.5
    %v1052 = vmul.f32 %v321, 0.5
    %v1053 = vmul.f32 %v560, 0.5
    %v1054 = vmul.f32 %v799, 0.5
    %v1055 = vmul.f32 %v1038, 0.5
    %v1056 = vtanh.pop %v1040
    %v1057 = vtanh.pop %v1041
    %v1058 = vtanh.pop %v1042
    %v1059 = vtanh.pop %v1043
    %v1060 = vtanh.pop %v1044
    %v1061 = vtanh.pop %v1045
    %v1062 = vtanh.pop %v1046
    %v1063 = vtanh.pop %v1047
    %v1064 = vtanh.pop %v1048
    %v1065 = vtanh.pop %v1049
    %v1066 = vtanh.pop %v1050
    %v1067 = vtanh.pop %v1051
    %v1068 = vtanh.pop %v1052
    %v1069 = vtanh.pop %v1053
    %v1070 = vtanh.pop %v1054
    %v1071 = vtanh.pop %v1055
    %v1072 = vmul.f32 %v1056, 0.5
    %v1073 = vmul.f32 %v1057, 0.5
    %v1074 = vmul.f32 %v1058, 0.5
    %v1075 = vmul.f32 %v1059, 0.5
    %v1076 = vmul.f32 %v1060, 0.5
    %v1077 = vmul.f32 %v1061, 0.5
    %v1078 = vmul.f32 %v1062, 0.5
    %v1079 = vmul.f32 %v1063, 0.5
    %v1080 = vmul.f32 %v1064, 0.5
    %v1081 = vmul.f32 %v1065, 0.5
    %v1082 = vmul.f32 %v1066, 0.5
    %v1083 = vmul.f32 %v1067, 0.5
    %v1084 = vmul.f32 %v1068, 0.5
    %v1085 = vmul.f32 %v1069, 0.5
    %v1086 = vmul.f32 %v1070, 0.5
    %v1087 = vmul.f32 %v1071, 0.5
    %v1088 = vadd.f32 %v1072, 0.5
    %v1089 = vadd.f32 %v1073, 0.5
    %v1090 = vadd.f32 %v1074, 0.5
    %v1091 = vadd.f32 %v1075, 0.5
    %v1092 = vadd.f32 %v1076, 0.5
    %v1093 = vadd.f32 %v1077, 0.5
    %v1094 = vadd.f32 %v1078, 0.5
    %v1095 = vadd.f32 %v1079, 0.5
    %v1096 = vadd.f32 %v1080, 0.5
    %v1097 = vadd.f32 %v1081, 0.5
    %v1098 = vadd.f32 %v1082, 0.5
    %v1099 = vadd.f32 %v1083, 0.5
    %v1100 = vadd.f32 %v1084, 0.5
    %v1101 = vadd.f32 %v1085, 0.5
    %v1102 = vadd.f32 %v1086, 0.5
    %v1103 = vadd.f32 %v1087, 0.5
    %v1104 = vld [vmem:[%s3] sm:$0xff]
    %v1105 = vld [vmem:[%s3 + $0x8] sm:$0xff]
    %v1106 = vld [vmem:[%s3 + $0x10] sm:$0xff]
    %v1107 = vld [vmem:[%s3 + $0x18] sm:$0xff]
    %v1108 = vld [vmem:[%s4] sm:$0xff]
    %v1109 = vld [vmem:[%s4 + $0x8] sm:$0xff]
    %v1110 = vld [vmem:[%s4 + $0x10] sm:$0xff]
    %v1111 = vld [vmem:[%s4 + $0x18] sm:$0xff]
    %1113 = vset.pattern.permute.xlu0 0
    %1114 = vperm.xlu0 %1113, %v1108
    %v1115 = vpop.permute.xlu0 %1114
    %1118 = vset.pattern.permute.xlu0 0
    %1119 = vperm.xlu0 %1118, %v1109
    %v1120 = vpop.permute.xlu0 %1119
    %1123 = vset.pattern.permute.xlu0 0
    %1124 = vperm.xlu0 %1123, %v1110
    %v1125 = vpop.permute.xlu0 %1124
    %1128 = vset.pattern.permute.xlu0 0
    %1129 = vperm.xlu0 %1128, %v1111
    %v1130 = vpop.permute.xlu0 %1129
    %vm1132 = vcmask 261120
    %v1134 = vsel %vm1132, %v1104, 0
    %v1137 = vsel %vm1132, %v1105, 0
    %v1140 = vsel %vm1132, %v1106, 0
    %v1143 = vsel %vm1132, %v1107, 0
    %1145 = vmatpush.msra.mxu0 0.0
    %1146 = vmatpush.msra.mxu0 0.0
    %1147 = vmatpush.msra.mxu0 0.0
    %1148 = vmatpush.msra.mxu0 0.0
    %1149 = vmatpush.msra.mxu0 0.0
    %1150 = vmatpush.msra.mxu0 0.0
    %1151 = vmatpush.msra.mxu0 0.0
    %1152 = vmatpush.msra.mxu0 0.0
    %1153 = vmatpush.msra.mxu0 0.0
    %1154 = vmatpush.msra.mxu0 0.0
    %1155 = vmatpush.msra.mxu0 0.0
    %1156 = vmatpush.msra.mxu0 0.0
    %v1157 = vand.u32 %v1100, 4294901760
    %1158 = vmatpush.msra.mxu0 %v1157
    %v1159 = vand.u32 %v1096, 4294901760
    %1160 = vmatpush.msra.mxu0 %v1159
    %v1161 = vand.u32 %v1092, 4294901760
    %1162 = vmatpush.msra.mxu0 %v1161
    %v1163 = vand.u32 %v1088, 4294901760
    %1164 = vmatpush.msra.mxu0 %v1163
    %v1165 = vand.u32 %v1134, 4294901760
    %v1166 = vsub.f32 %v1134, %v1165
    %v1167 = vand.u32 %v1166, 4294901760
    %v1168 = vsub.f32 %v1166, %v1167
    %v1169 = vand.u32 %v1168, 4294901760
    %1170 = vmatmul.f32.gmra.mxu0 %v1169
    %v1171 = vpop.f32.mrf.mxu0
    %v1172 = vadd.f32 %v1115, %v1171
    %v1173 = vand.u32 %v1137, 4294901760
    %v1174 = vsub.f32 %v1137, %v1173
    %v1175 = vand.u32 %v1174, 4294901760
    %v1176 = vsub.f32 %v1174, %v1175
    %v1177 = vand.u32 %v1176, 4294901760
    %1178 = vmatmul.f32.gmra.mxu0 %v1177
    %v1179 = vpop.f32.mrf.mxu0
    %v1180 = vadd.f32 %v1120, %v1179
    %v1181 = vand.u32 %v1140, 4294901760
    %v1182 = vsub.f32 %v1140, %v1181
    %v1183 = vand.u32 %v1182, 4294901760
    %v1184 = vsub.f32 %v1182, %v1183
    %v1185 = vand.u32 %v1184, 4294901760
    %1186 = vmatmul.f32.gmra.mxu0 %v1185
    %v1187 = vpop.f32.mrf.mxu0
    %v1188 = vadd.f32 %v1125, %v1187
    %v1189 = vand.u32 %v1143, 4294901760
    %v1190 = vsub.f32 %v1143, %v1189
    %v1191 = vand.u32 %v1190, 4294901760
    %v1192 = vsub.f32 %v1190, %v1191
    %v1193 = vand.u32 %v1192, 4294901760
    %1194 = vmatmul.f32.gmra.mxu0 %v1193
    %v1195 = vpop.f32.mrf.mxu0
    %v1196 = vadd.f32 %v1130, %v1195
    %1197 = vdwg.mxu0
    %1198 = vmatpush.msra.mxu0 0.0
    %1199 = vmatpush.msra.mxu0 0.0
    %1200 = vmatpush.msra.mxu0 0.0
    %1201 = vmatpush.msra.mxu0 0.0
    %1202 = vmatpush.msra.mxu0 0.0
    %1203 = vmatpush.msra.mxu0 0.0
    %1204 = vmatpush.msra.mxu0 0.0
    %1205 = vmatpush.msra.mxu0 0.0
    %1206 = vmatpush.msra.mxu0 0.0
    %1207 = vmatpush.msra.mxu0 0.0
    %1208 = vmatpush.msra.mxu0 0.0
    %1209 = vmatpush.msra.mxu0 0.0
    %v1210 = vand.u32 %v1100, 4294901760
    %v1211 = vsub.f32 %v1100, %v1210
    %v1212 = vand.u32 %v1211, 4294901760
    %v1213 = vsub.f32 %v1211, %v1212
    %v1214 = vand.u32 %v1213, 4294901760
    %1215 = vmatpush.msra.mxu0 %v1214
    %v1216 = vand.u32 %v1096, 4294901760
    %v1217 = vsub.f32 %v1096, %v1216
    %v1218 = vand.u32 %v1217, 4294901760
    %v1219 = vsub.f32 %v1217, %v1218
    %v1220 = vand.u32 %v1219, 4294901760
    %1221 = vmatpush.msra.mxu0 %v1220
    %v1222 = vand.u32 %v1092, 4294901760
    %v1223 = vsub.f32 %v1092, %v1222
    %v1224 = vand.u32 %v1223, 4294901760
    %v1225 = vsub.f32 %v1223, %v1224
    %v1226 = vand.u32 %v1225, 4294901760
    %1227 = vmatpush.msra.mxu0 %v1226
    %v1228 = vand.u32 %v1088, 4294901760
    %v1229 = vsub.f32 %v1088, %v1228
    %v1230 = vand.u32 %v1229, 4294901760
    %v1231 = vsub.f32 %v1229, %v1230
    %v1232 = vand.u32 %v1231, 4294901760
    %1233 = vmatpush.msra.mxu0 %v1232
    %v1234 = vand.u32 %v1134, 4294901760
    %1235 = vmatmul.f32.gmra.mxu0 %v1234
    %v1236 = vpop.f32.mrf.mxu0
    %v1237 = vadd.f32 %v1172, %v1236
    %v1238 = vand.u32 %v1137, 4294901760
    %1239 = vmatmul.f32.gmra.mxu0 %v1238
    %v1240 = vpop.f32.mrf.mxu0
    %v1241 = vadd.f32 %v1180, %v1240
    %v1242 = vand.u32 %v1140, 4294901760
    %1243 = vmatmul.f32.gmra.mxu0 %v1242
    %v1244 = vpop.f32.mrf.mxu0
    %v1245 = vadd.f32 %v1188, %v1244
    %v1246 = vand.u32 %v1143, 4294901760
    %1247 = vmatmul.f32.gmra.mxu0 %v1246
    %v1248 = vpop.f32.mrf.mxu0
    %v1249 = vadd.f32 %v1196, %v1248
    %1250 = vdwg.mxu0
    %1251 = vmatpush.msra.mxu0 0.0
    %1252 = vmatpush.msra.mxu0 0.0
    %1253 = vmatpush.msra.mxu0 0.0
    %1254 = vmatpush.msra.mxu0 0.0
    %1255 = vmatpush.msra.mxu0 0.0
    %1256 = vmatpush.msra.mxu0 0.0
    %1257 = vmatpush.msra.mxu0 0.0
    %1258 = vmatpush.msra.mxu0 0.0
    %1259 = vmatpush.msra.mxu0 0.0
    %1260 = vmatpush.msra.mxu0 0.0
    %1261 = vmatpush.msra.mxu0 0.0
    %1262 = vmatpush.msra.mxu0 0.0
    %v1263 = vand.u32 %v1100, 4294901760
    %v1264 = vsub.f32 %v1100, %v1263
    %1265 = vmatpush.msra.mxu0 %v1264
    %v1266 = vand.u32 %v1096, 4294901760
    %v1267 = vsub.f32 %v1096, %v1266
    %1268 = vmatpush.msra.mxu0 %v1267
    %v1269 = vand.u32 %v1092, 4294901760
    %v1270 = vsub.f32 %v1092, %v1269
    %1271 = vmatpush.msra.mxu0 %v1270
    %v1272 = vand.u32 %v1088, 4294901760
    %v1273 = vsub.f32 %v1088, %v1272
    %1274 = vmatpush.msra.mxu0 %v1273
    %v1275 = vand.u32 %v1134, 4294901760
    %v1276 = vsub.f32 %v1134, %v1275
    %1277 = vmatmul.f32.gmra.mxu0 %v1276
    %v1278 = vpop.f32.mrf.mxu0
    %v1279 = vadd.f32 %v1237, %v1278
    %v1280 = vand.u32 %v1137, 4294901760
    %v1281 = vsub.f32 %v1137, %v1280
    %1282 = vmatmul.f32.gmra.mxu0 %v1281
    %v1283 = vpop.f32.mrf.mxu0
    %v1284 = vadd.f32 %v1241, %v1283
    %v1285 = vand.u32 %v1140, 4294901760
    %v1286 = vsub.f32 %v1140, %v1285
    %1287 = vmatmul.f32.gmra.mxu0 %v1286
    %v1288 = vpop.f32.mrf.mxu0
    %v1289 = vadd.f32 %v1245, %v1288
    %v1290 = vand.u32 %v1143, 4294901760
    %v1291 = vsub.f32 %v1143, %v1290
    %1292 = vmatmul.f32.gmra.mxu0 %v1291
    %v1293 = vpop.f32.mrf.mxu0
    %v1294 = vadd.f32 %v1249, %v1293
    %1295 = vdwg.mxu0
    %1296 = vmatpush.msra.mxu0 0.0
    %1297 = vmatpush.msra.mxu0 0.0
    %1298 = vmatpush.msra.mxu0 0.0
    %1299 = vmatpush.msra.mxu0 0.0
    %1300 = vmatpush.msra.mxu0 0.0
    %1301 = vmatpush.msra.mxu0 0.0
    %1302 = vmatpush.msra.mxu0 0.0
    %1303 = vmatpush.msra.mxu0 0.0
    %1304 = vmatpush.msra.mxu0 0.0
    %1305 = vmatpush.msra.mxu0 0.0
    %1306 = vmatpush.msra.mxu0 0.0
    %1307 = vmatpush.msra.mxu0 0.0
    %v1308 = vand.u32 %v1100, 4294901760
    %1309 = vmatpush.msra.mxu0 %v1308
    %v1310 = vand.u32 %v1096, 4294901760
    %1311 = vmatpush.msra.mxu0 %v1310
    %v1312 = vand.u32 %v1092, 4294901760
    %1313 = vmatpush.msra.mxu0 %v1312
    %v1314 = vand.u32 %v1088, 4294901760
    %1315 = vmatpush.msra.mxu0 %v1314
    %v1316 = vand.u32 %v1134, 4294901760
    %v1317 = vsub.f32 %v1134, %v1316
    %v1318 = vand.u32 %v1317, 4294901760
    %1319 = vmatmul.f32.gmra.mxu0 %v1318
    %v1320 = vpop.f32.mrf.mxu0
    %v1321 = vadd.f32 %v1279, %v1320
    %v1322 = vand.u32 %v1137, 4294901760
    %v1323 = vsub.f32 %v1137, %v1322
    %v1324 = vand.u32 %v1323, 4294901760
    %1325 = vmatmul.f32.gmra.mxu0 %v1324
    %v1326 = vpop.f32.mrf.mxu0
    %v1327 = vadd.f32 %v1284, %v1326
    %v1328 = vand.u32 %v1140, 4294901760
    %v1329 = vsub.f32 %v1140, %v1328
    %v1330 = vand.u32 %v1329, 4294901760
    %1331 = vmatmul.f32.gmra.mxu0 %v1330
    %v1332 = vpop.f32.mrf.mxu0
    %v1333 = vadd.f32 %v1289, %v1332
    %v1334 = vand.u32 %v1143, 4294901760
    %v1335 = vsub.f32 %v1143, %v1334
    %v1336 = vand.u32 %v1335, 4294901760
    %1337 = vmatmul.f32.gmra.mxu0 %v1336
    %v1338 = vpop.f32.mrf.mxu0
    %v1339 = vadd.f32 %v1294, %v1338
    %1340 = vdwg.mxu0
    %1341 = vmatpush.msra.mxu0 0.0
    %1342 = vmatpush.msra.mxu0 0.0
    %1343 = vmatpush.msra.mxu0 0.0
    %1344 = vmatpush.msra.mxu0 0.0
    %1345 = vmatpush.msra.mxu0 0.0
    %1346 = vmatpush.msra.mxu0 0.0
    %1347 = vmatpush.msra.mxu0 0.0
    %1348 = vmatpush.msra.mxu0 0.0
    %1349 = vmatpush.msra.mxu0 0.0
    %1350 = vmatpush.msra.mxu0 0.0
    %1351 = vmatpush.msra.mxu0 0.0
    %1352 = vmatpush.msra.mxu0 0.0
    %v1353 = vand.u32 %v1100, 4294901760
    %v1354 = vsub.f32 %v1100, %v1353
    %v1355 = vand.u32 %v1354, 4294901760
    %1356 = vmatpush.msra.mxu0 %v1355
    %v1357 = vand.u32 %v1096, 4294901760
    %v1358 = vsub.f32 %v1096, %v1357
    %v1359 = vand.u32 %v1358, 4294901760
    %1360 = vmatpush.msra.mxu0 %v1359
    %v1361 = vand.u32 %v1092, 4294901760
    %v1362 = vsub.f32 %v1092, %v1361
    %v1363 = vand.u32 %v1362, 4294901760
    %1364 = vmatpush.msra.mxu0 %v1363
    %v1365 = vand.u32 %v1088, 4294901760
    %v1366 = vsub.f32 %v1088, %v1365
    %v1367 = vand.u32 %v1366, 4294901760
    %1368 = vmatpush.msra.mxu0 %v1367
    %v1369 = vand.u32 %v1134, 4294901760
    %1370 = vmatmul.f32.gmra.mxu0 %v1369
    %v1371 = vpop.f32.mrf.mxu0
    %v1372 = vadd.f32 %v1321, %v1371
    %v1373 = vand.u32 %v1137, 4294901760
    %1374 = vmatmul.f32.gmra.mxu0 %v1373
    %v1375 = vpop.f32.mrf.mxu0
    %v1376 = vadd.f32 %v1327, %v1375
    %v1377 = vand.u32 %v1140, 4294901760
    %1378 = vmatmul.f32.gmra.mxu0 %v1377
    %v1379 = vpop.f32.mrf.mxu0
    %v1380 = vadd.f32 %v1333, %v1379
    %v1381 = vand.u32 %v1143, 4294901760
    %1382 = vmatmul.f32.gmra.mxu0 %v1381
    %v1383 = vpop.f32.mrf.mxu0
    %v1384 = vadd.f32 %v1339, %v1383
    %1385 = vdwg.mxu0
    %1386 = vmatpush.msra.mxu0 0.0
    %1387 = vmatpush.msra.mxu0 0.0
    %1388 = vmatpush.msra.mxu0 0.0
    %1389 = vmatpush.msra.mxu0 0.0
    %1390 = vmatpush.msra.mxu0 0.0
    %1391 = vmatpush.msra.mxu0 0.0
    %1392 = vmatpush.msra.mxu0 0.0
    %1393 = vmatpush.msra.mxu0 0.0
    %1394 = vmatpush.msra.mxu0 0.0
    %1395 = vmatpush.msra.mxu0 0.0
    %1396 = vmatpush.msra.mxu0 0.0
    %1397 = vmatpush.msra.mxu0 0.0
    %v1398 = vand.u32 %v1100, 4294901760
    %1399 = vmatpush.msra.mxu0 %v1398
    %v1400 = vand.u32 %v1096, 4294901760
    %1401 = vmatpush.msra.mxu0 %v1400
    %v1402 = vand.u32 %v1092, 4294901760
    %1403 = vmatpush.msra.mxu0 %v1402
    %v1404 = vand.u32 %v1088, 4294901760
    %1405 = vmatpush.msra.mxu0 %v1404
    %v1406 = vand.u32 %v1134, 4294901760
    %1407 = vmatmul.f32.gmra.mxu0 %v1406
    %v1408 = vpop.f32.mrf.mxu0
    %v1409 = vadd.f32 %v1372, %v1408
    %v1410 = vand.u32 %v1137, 4294901760
    %1411 = vmatmul.f32.gmra.mxu0 %v1410
    %v1412 = vpop.f32.mrf.mxu0
    %v1413 = vadd.f32 %v1376, %v1412
    %v1414 = vand.u32 %v1140, 4294901760
    %1415 = vmatmul.f32.gmra.mxu0 %v1414
    %v1416 = vpop.f32.mrf.mxu0
    %v1417 = vadd.f32 %v1380, %v1416
    %v1418 = vand.u32 %v1143, 4294901760
    %1419 = vmatmul.f32.gmra.mxu0 %v1418
    %v1420 = vpop.f32.mrf.mxu0
    %v1421 = vadd.f32 %v1384, %v1420
    %1422 = vdwg.mxu0
    %1423 = vmatpush.msra.mxu0 0.0
    %1424 = vmatpush.msra.mxu0 0.0
    %1425 = vmatpush.msra.mxu0 0.0
    %1426 = vmatpush.msra.mxu0 0.0
    %1427 = vmatpush.msra.mxu0 0.0
    %1428 = vmatpush.msra.mxu0 0.0
    %1429 = vmatpush.msra.mxu0 0.0
    %1430 = vmatpush.msra.mxu0 0.0
    %1431 = vmatpush.msra.mxu0 0.0
    %1432 = vmatpush.msra.mxu0 0.0
    %1433 = vmatpush.msra.mxu0 0.0
    %1434 = vmatpush.msra.mxu0 0.0
    %v1435 = vand.u32 %v1101, 4294901760
    %1436 = vmatpush.msra.mxu0 %v1435
    %v1437 = vand.u32 %v1097, 4294901760
    %1438 = vmatpush.msra.mxu0 %v1437
    %v1439 = vand.u32 %v1093, 4294901760
    %1440 = vmatpush.msra.mxu0 %v1439
    %v1441 = vand.u32 %v1089, 4294901760
    %1442 = vmatpush.msra.mxu0 %v1441
    %v1443 = vand.u32 %v1134, 4294901760
    %v1444 = vsub.f32 %v1134, %v1443
    %v1445 = vand.u32 %v1444, 4294901760
    %v1446 = vsub.f32 %v1444, %v1445
    %v1447 = vand.u32 %v1446, 4294901760
    %1448 = vmatmul.f32.gmra.mxu0 %v1447
    %v1449 = vpop.f32.mrf.mxu0
    %v1450 = vadd.f32 %v1115, %v1449
    %v1451 = vand.u32 %v1137, 4294901760
    %v1452 = vsub.f32 %v1137, %v1451
    %v1453 = vand.u32 %v1452, 4294901760
    %v1454 = vsub.f32 %v1452, %v1453
    %v1455 = vand.u32 %v1454, 4294901760
    %1456 = vmatmul.f32.gmra.mxu0 %v1455
    %v1457 = vpop.f32.mrf.mxu0
    %v1458 = vadd.f32 %v1120, %v1457
    %v1459 = vand.u32 %v1140, 4294901760
    %v1460 = vsub.f32 %v1140, %v1459
    %v1461 = vand.u32 %v1460, 4294901760
    %v1462 = vsub.f32 %v1460, %v1461
    %v1463 = vand.u32 %v1462, 4294901760
    %1464 = vmatmul.f32.gmra.mxu0 %v1463
    %v1465 = vpop.f32.mrf.mxu0
    %v1466 = vadd.f32 %v1125, %v1465
    %v1467 = vand.u32 %v1143, 4294901760
    %v1468 = vsub.f32 %v1143, %v1467
    %v1469 = vand.u32 %v1468, 4294901760
    %v1470 = vsub.f32 %v1468, %v1469
    %v1471 = vand.u32 %v1470, 4294901760
    %1472 = vmatmul.f32.gmra.mxu0 %v1471
    %v1473 = vpop.f32.mrf.mxu0
    %v1474 = vadd.f32 %v1130, %v1473
    %1475 = vdwg.mxu0
    %1476 = vmatpush.msra.mxu0 0.0
    %1477 = vmatpush.msra.mxu0 0.0
    %1478 = vmatpush.msra.mxu0 0.0
    %1479 = vmatpush.msra.mxu0 0.0
    %1480 = vmatpush.msra.mxu0 0.0
    %1481 = vmatpush.msra.mxu0 0.0
    %1482 = vmatpush.msra.mxu0 0.0
    %1483 = vmatpush.msra.mxu0 0.0
    %1484 = vmatpush.msra.mxu0 0.0
    %1485 = vmatpush.msra.mxu0 0.0
    %1486 = vmatpush.msra.mxu0 0.0
    %1487 = vmatpush.msra.mxu0 0.0
    %v1488 = vand.u32 %v1101, 4294901760
    %v1489 = vsub.f32 %v1101, %v1488
    %v1490 = vand.u32 %v1489, 4294901760
    %v1491 = vsub.f32 %v1489, %v1490
    %v1492 = vand.u32 %v1491, 4294901760
    %1493 = vmatpush.msra.mxu0 %v1492
    %v1494 = vand.u32 %v1097, 4294901760
    %v1495 = vsub.f32 %v1097, %v1494
    %v1496 = vand.u32 %v1495, 4294901760
    %v1497 = vsub.f32 %v1495, %v1496
    %v1498 = vand.u32 %v1497, 4294901760
    %1499 = vmatpush.msra.mxu0 %v1498
    %v1500 = vand.u32 %v1093, 4294901760
    %v1501 = vsub.f32 %v1093, %v1500
    %v1502 = vand.u32 %v1501, 4294901760
    %v1503 = vsub.f32 %v1501, %v1502
    %v1504 = vand.u32 %v1503, 4294901760
    %1505 = vmatpush.msra.mxu0 %v1504
    %v1506 = vand.u32 %v1089, 4294901760
    %v1507 = vsub.f32 %v1089, %v1506
    %v1508 = vand.u32 %v1507, 4294901760
    %v1509 = vsub.f32 %v1507, %v1508
    %v1510 = vand.u32 %v1509, 4294901760
    %1511 = vmatpush.msra.mxu0 %v1510
    %v1512 = vand.u32 %v1134, 4294901760
    %1513 = vmatmul.f32.gmra.mxu0 %v1512
    %v1514 = vpop.f32.mrf.mxu0
    %v1515 = vadd.f32 %v1450, %v1514
    %v1516 = vand.u32 %v1137, 4294901760
    %1517 = vmatmul.f32.gmra.mxu0 %v1516
    %v1518 = vpop.f32.mrf.mxu0
    %v1519 = vadd.f32 %v1458, %v1518
    %v1520 = vand.u32 %v1140, 4294901760
    %1521 = vmatmul.f32.gmra.mxu0 %v1520
    %v1522 = vpop.f32.mrf.mxu0
    %v1523 = vadd.f32 %v1466, %v1522
    %v1524 = vand.u32 %v1143, 4294901760
    %1525 = vmatmul.f32.gmra.mxu0 %v1524
    %v1526 = vpop.f32.mrf.mxu0
    %v1527 = vadd.f32 %v1474, %v1526
    %1528 = vdwg.mxu0
    %1529 = vmatpush.msra.mxu0 0.0
    %1530 = vmatpush.msra.mxu0 0.0
    %1531 = vmatpush.msra.mxu0 0.0
    %1532 = vmatpush.msra.mxu0 0.0
    %1533 = vmatpush.msra.mxu0 0.0
    %1534 = vmatpush.msra.mxu0 0.0
    %1535 = vmatpush.msra.mxu0 0.0
    %1536 = vmatpush.msra.mxu0 0.0
    %1537 = vmatpush.msra.mxu0 0.0
    %1538 = vmatpush.msra.mxu0 0.0
    %1539 = vmatpush.msra.mxu0 0.0
    %1540 = vmatpush.msra.mxu0 0.0
    %v1541 = vand.u32 %v1101, 4294901760
    %v1542 = vsub.f32 %v1101, %v1541
    %1543 = vmatpush.msra.mxu0 %v1542
    %v1544 = vand.u32 %v1097, 4294901760
    %v1545 = vsub.f32 %v1097, %v1544
    %1546 = vmatpush.msra.mxu0 %v1545
    %v1547 = vand.u32 %v1093, 4294901760
    %v1548 = vsub.f32 %v1093, %v1547
    %1549 = vmatpush.msra.mxu0 %v1548
    %v1550 = vand.u32 %v1089, 4294901760
    %v1551 = vsub.f32 %v1089, %v1550
    %1552 = vmatpush.msra.mxu0 %v1551
    %v1553 = vand.u32 %v1134, 4294901760
    %v1554 = vsub.f32 %v1134, %v1553
    %1555 = vmatmul.f32.gmra.mxu0 %v1554
    %v1556 = vpop.f32.mrf.mxu0
    %v1557 = vadd.f32 %v1515, %v1556
    %v1558 = vand.u32 %v1137, 4294901760
    %v1559 = vsub.f32 %v1137, %v1558
    %1560 = vmatmul.f32.gmra.mxu0 %v1559
    %v1561 = vpop.f32.mrf.mxu0
    %v1562 = vadd.f32 %v1519, %v1561
    %v1563 = vand.u32 %v1140, 4294901760
    %v1564 = vsub.f32 %v1140, %v1563
    %1565 = vmatmul.f32.gmra.mxu0 %v1564
    %v1566 = vpop.f32.mrf.mxu0
    %v1567 = vadd.f32 %v1523, %v1566
    %v1568 = vand.u32 %v1143, 4294901760
    %v1569 = vsub.f32 %v1143, %v1568
    %1570 = vmatmul.f32.gmra.mxu0 %v1569
    %v1571 = vpop.f32.mrf.mxu0
    %v1572 = vadd.f32 %v1527, %v1571
    %1573 = vdwg.mxu0
    %1574 = vmatpush.msra.mxu0 0.0
    %1575 = vmatpush.msra.mxu0 0.0
    %1576 = vmatpush.msra.mxu0 0.0
    %1577 = vmatpush.msra.mxu0 0.0
    %1578 = vmatpush.msra.mxu0 0.0
    %1579 = vmatpush.msra.mxu0 0.0
    %1580 = vmatpush.msra.mxu0 0.0
    %1581 = vmatpush.msra.mxu0 0.0
    %1582 = vmatpush.msra.mxu0 0.0
    %1583 = vmatpush.msra.mxu0 0.0
    %1584 = vmatpush.msra.mxu0 0.0
    %1585 = vmatpush.msra.mxu0 0.0
    %v1586 = vand.u32 %v1101, 4294901760
    %1587 = vmatpush.msra.mxu0 %v1586
    %v1588 = vand.u32 %v1097, 4294901760
    %1589 = vmatpush.msra.mxu0 %v1588
    %v1590 = vand.u32 %v1093, 4294901760
    %1591 = vmatpush.msra.mxu0 %v1590
    %v1592 = vand.u32 %v1089, 4294901760
    %1593 = vmatpush.msra.mxu0 %v1592
    %v1594 = vand.u32 %v1134, 4294901760
    %v1595 = vsub.f32 %v1134, %v1594
    %v1596 = vand.u32 %v1595, 4294901760
    %1597 = vmatmul.f32.gmra.mxu0 %v1596
    %v1598 = vpop.f32.mrf.mxu0
    %v1599 = vadd.f32 %v1557, %v1598
    %v1600 = vand.u32 %v1137, 4294901760
    %v1601 = vsub.f32 %v1137, %v1600
    %v1602 = vand.u32 %v1601, 4294901760
    %1603 = vmatmul.f32.gmra.mxu0 %v1602
    %v1604 = vpop.f32.mrf.mxu0
    %v1605 = vadd.f32 %v1562, %v1604
    %v1606 = vand.u32 %v1140, 4294901760
    %v1607 = vsub.f32 %v1140, %v1606
    %v1608 = vand.u32 %v1607, 4294901760
    %1609 = vmatmul.f32.gmra.mxu0 %v1608
    %v1610 = vpop.f32.mrf.mxu0
    %v1611 = vadd.f32 %v1567, %v1610
    %v1612 = vand.u32 %v1143, 4294901760
    %v1613 = vsub.f32 %v1143, %v1612
    %v1614 = vand.u32 %v1613, 4294901760
    %1615 = vmatmul.f32.gmra.mxu0 %v1614
    %v1616 = vpop.f32.mrf.mxu0
    %v1617 = vadd.f32 %v1572, %v1616
    %1618 = vdwg.mxu0
    %1619 = vmatpush.msra.mxu0 0.0
    %1620 = vmatpush.msra.mxu0 0.0
    %1621 = vmatpush.msra.mxu0 0.0
    %1622 = vmatpush.msra.mxu0 0.0
    %1623 = vmatpush.msra.mxu0 0.0
    %1624 = vmatpush.msra.mxu0 0.0
    %1625 = vmatpush.msra.mxu0 0.0
    %1626 = vmatpush.msra.mxu0 0.0
    %1627 = vmatpush.msra.mxu0 0.0
    %1628 = vmatpush.msra.mxu0 0.0
    %1629 = vmatpush.msra.mxu0 0.0
    %1630 = vmatpush.msra.mxu0 0.0
    %v1631 = vand.u32 %v1101, 4294901760
    %v1632 = vsub.f32 %v1101, %v1631
    %v1633 = vand.u32 %v1632, 4294901760
    %1634 = vmatpush.msra.mxu0 %v1633
    %v1635 = vand.u32 %v1097, 4294901760
    %v1636 = vsub.f32 %v1097, %v1635
    %v1637 = vand.u32 %v1636, 4294901760
    %1638 = vmatpush.msra.mxu0 %v1637
    %v1639 = vand.u32 %v1093, 4294901760
    %v1640 = vsub.f32 %v1093, %v1639
    %v1641 = vand.u32 %v1640, 4294901760
    %1642 = vmatpush.msra.mxu0 %v1641
    %v1643 = vand.u32 %v1089, 4294901760
    %v1644 = vsub.f32 %v1089, %v1643
    %v1645 = vand.u32 %v1644, 4294901760
    %1646 = vmatpush.msra.mxu0 %v1645
    %v1647 = vand.u32 %v1134, 4294901760
    %1648 = vmatmul.f32.gmra.mxu0 %v1647
    %v1649 = vpop.f32.mrf.mxu0
    %v1650 = vadd.f32 %v1599, %v1649
    %v1651 = vand.u32 %v1137, 4294901760
    %1652 = vmatmul.f32.gmra.mxu0 %v1651
    %v1653 = vpop.f32.mrf.mxu0
    %v1654 = vadd.f32 %v1605, %v1653
    %v1655 = vand.u32 %v1140, 4294901760
    %1656 = vmatmul.f32.gmra.mxu0 %v1655
    %v1657 = vpop.f32.mrf.mxu0
    %v1658 = vadd.f32 %v1611, %v1657
    %v1659 = vand.u32 %v1143, 4294901760
    %1660 = vmatmul.f32.gmra.mxu0 %v1659
    %v1661 = vpop.f32.mrf.mxu0
    %v1662 = vadd.f32 %v1617, %v1661
    %1663 = vdwg.mxu0
    %1664 = vmatpush.msra.mxu0 0.0
    %1665 = vmatpush.msra.mxu0 0.0
    %1666 = vmatpush.msra.mxu0 0.0
    %1667 = vmatpush.msra.mxu0 0.0
    %1668 = vmatpush.msra.mxu0 0.0
    %1669 = vmatpush.msra.mxu0 0.0
    %1670 = vmatpush.msra.mxu0 0.0
    %1671 = vmatpush.msra.mxu0 0.0
    %1672 = vmatpush.msra.mxu0 0.0
    %1673 = vmatpush.msra.mxu0 0.0
    %1674 = vmatpush.msra.mxu0 0.0
    %1675 = vmatpush.msra.mxu0 0.0
    %v1676 = vand.u32 %v1101, 4294901760
    %1677 = vmatpush.msra.mxu0 %v1676
    %v1678 = vand.u32 %v1097, 4294901760
    %1679 = vmatpush.msra.mxu0 %v1678
    %v1680 = vand.u32 %v1093, 4294901760
    %1681 = vmatpush.msra.mxu0 %v1680
    %v1682 = vand.u32 %v1089, 4294901760
    %1683 = vmatpush.msra.mxu0 %v1682
    %v1684 = vand.u32 %v1134, 4294901760
    %1685 = vmatmul.f32.gmra.mxu0 %v1684
    %v1686 = vpop.f32.mrf.mxu0
    %v1687 = vadd.f32 %v1650, %v1686
    %v1688 = vand.u32 %v1137, 4294901760
    %1689 = vmatmul.f32.gmra.mxu0 %v1688
    %v1690 = vpop.f32.mrf.mxu0
    %v1691 = vadd.f32 %v1654, %v1690
    %v1692 = vand.u32 %v1140, 4294901760
    %1693 = vmatmul.f32.gmra.mxu0 %v1692
    %v1694 = vpop.f32.mrf.mxu0
    %v1695 = vadd.f32 %v1658, %v1694
    %v1696 = vand.u32 %v1143, 4294901760
    %1697 = vmatmul.f32.gmra.mxu0 %v1696
    %v1698 = vpop.f32.mrf.mxu0
    %v1699 = vadd.f32 %v1662, %v1698
    %1700 = vdwg.mxu0
    %1701 = vmatpush.msra.mxu0 0.0
    %1702 = vmatpush.msra.mxu0 0.0
    %1703 = vmatpush.msra.mxu0 0.0
    %1704 = vmatpush.msra.mxu0 0.0
    %1705 = vmatpush.msra.mxu0 0.0
    %1706 = vmatpush.msra.mxu0 0.0
    %1707 = vmatpush.msra.mxu0 0.0
    %1708 = vmatpush.msra.mxu0 0.0
    %1709 = vmatpush.msra.mxu0 0.0
    %1710 = vmatpush.msra.mxu0 0.0
    %1711 = vmatpush.msra.mxu0 0.0
    %1712 = vmatpush.msra.mxu0 0.0
    %v1713 = vand.u32 %v1102, 4294901760
    %1714 = vmatpush.msra.mxu0 %v1713
    %v1715 = vand.u32 %v1098, 4294901760
    %1716 = vmatpush.msra.mxu0 %v1715
    %v1717 = vand.u32 %v1094, 4294901760
    %1718 = vmatpush.msra.mxu0 %v1717
    %v1719 = vand.u32 %v1090, 4294901760
    %1720 = vmatpush.msra.mxu0 %v1719
    %v1721 = vand.u32 %v1134, 4294901760
    %v1722 = vsub.f32 %v1134, %v1721
    %v1723 = vand.u32 %v1722, 4294901760
    %v1724 = vsub.f32 %v1722, %v1723
    %v1725 = vand.u32 %v1724, 4294901760
    %1726 = vmatmul.f32.gmra.mxu0 %v1725
    %v1727 = vpop.f32.mrf.mxu0
    %v1728 = vadd.f32 %v1115, %v1727
    %v1729 = vand.u32 %v1137, 4294901760
    %v1730 = vsub.f32 %v1137, %v1729
    %v1731 = vand.u32 %v1730, 4294901760
    %v1732 = vsub.f32 %v1730, %v1731
    %v1733 = vand.u32 %v1732, 4294901760
    %1734 = vmatmul.f32.gmra.mxu0 %v1733
    %v1735 = vpop.f32.mrf.mxu0
    %v1736 = vadd.f32 %v1120, %v1735
    %v1737 = vand.u32 %v1140, 4294901760
    %v1738 = vsub.f32 %v1140, %v1737
    %v1739 = vand.u32 %v1738, 4294901760
    %v1740 = vsub.f32 %v1738, %v1739
    %v1741 = vand.u32 %v1740, 4294901760
    %1742 = vmatmul.f32.gmra.mxu0 %v1741
    %v1743 = vpop.f32.mrf.mxu0
    %v1744 = vadd.f32 %v1125, %v1743
    %v1745 = vand.u32 %v1143, 4294901760
    %v1746 = vsub.f32 %v1143, %v1745
    %v1747 = vand.u32 %v1746, 4294901760
    %v1748 = vsub.f32 %v1746, %v1747
    %v1749 = vand.u32 %v1748, 4294901760
    %1750 = vmatmul.f32.gmra.mxu0 %v1749
    %v1751 = vpop.f32.mrf.mxu0
    %v1752 = vadd.f32 %v1130, %v1751
    %1753 = vdwg.mxu0
    %1754 = vmatpush.msra.mxu0 0.0
    %1755 = vmatpush.msra.mxu0 0.0
    %1756 = vmatpush.msra.mxu0 0.0
    %1757 = vmatpush.msra.mxu0 0.0
    %1758 = vmatpush.msra.mxu0 0.0
    %1759 = vmatpush.msra.mxu0 0.0
    %1760 = vmatpush.msra.mxu0 0.0
    %1761 = vmatpush.msra.mxu0 0.0
    %1762 = vmatpush.msra.mxu0 0.0
    %1763 = vmatpush.msra.mxu0 0.0
    %1764 = vmatpush.msra.mxu0 0.0
    %1765 = vmatpush.msra.mxu0 0.0
    %v1766 = vand.u32 %v1102, 4294901760
    %v1767 = vsub.f32 %v1102, %v1766
    %v1768 = vand.u32 %v1767, 4294901760
    %v1769 = vsub.f32 %v1767, %v1768
    %v1770 = vand.u32 %v1769, 4294901760
    %1771 = vmatpush.msra.mxu0 %v1770
    %v1772 = vand.u32 %v1098, 4294901760
    %v1773 = vsub.f32 %v1098, %v1772
    %v1774 = vand.u32 %v1773, 4294901760
    %v1775 = vsub.f32 %v1773, %v1774
    %v1776 = vand.u32 %v1775, 4294901760
    %1777 = vmatpush.msra.mxu0 %v1776
    %v1778 = vand.u32 %v1094, 4294901760
    %v1779 = vsub.f32 %v1094, %v1778
    %v1780 = vand.u32 %v1779, 4294901760
    %v1781 = vsub.f32 %v1779, %v1780
    %v1782 = vand.u32 %v1781, 4294901760
    %1783 = vmatpush.msra.mxu0 %v1782
    %v1784 = vand.u32 %v1090, 4294901760
    %v1785 = vsub.f32 %v1090, %v1784
    %v1786 = vand.u32 %v1785, 4294901760
    %v1787 = vsub.f32 %v1785, %v1786
    %v1788 = vand.u32 %v1787, 4294901760
    %1789 = vmatpush.msra.mxu0 %v1788
    %v1790 = vand.u32 %v1134, 4294901760
    %1791 = vmatmul.f32.gmra.mxu0 %v1790
    %v1792 = vpop.f32.mrf.mxu0
    %v1793 = vadd.f32 %v1728, %v1792
    %v1794 = vand.u32 %v1137, 4294901760
    %1795 = vmatmul.f32.gmra.mxu0 %v1794
    %v1796 = vpop.f32.mrf.mxu0
    %v1797 = vadd.f32 %v1736, %v1796
    %v1798 = vand.u32 %v1140, 4294901760
    %1799 = vmatmul.f32.gmra.mxu0 %v1798
    %v1800 = vpop.f32.mrf.mxu0
    %v1801 = vadd.f32 %v1744, %v1800
    %v1802 = vand.u32 %v1143, 4294901760
    %1803 = vmatmul.f32.gmra.mxu0 %v1802
    %v1804 = vpop.f32.mrf.mxu0
    %v1805 = vadd.f32 %v1752, %v1804
    %1806 = vdwg.mxu0
    %1807 = vmatpush.msra.mxu0 0.0
    %1808 = vmatpush.msra.mxu0 0.0
    %1809 = vmatpush.msra.mxu0 0.0
    %1810 = vmatpush.msra.mxu0 0.0
    %1811 = vmatpush.msra.mxu0 0.0
    %1812 = vmatpush.msra.mxu0 0.0
    %1813 = vmatpush.msra.mxu0 0.0
    %1814 = vmatpush.msra.mxu0 0.0
    %1815 = vmatpush.msra.mxu0 0.0
    %1816 = vmatpush.msra.mxu0 0.0
    %1817 = vmatpush.msra.mxu0 0.0
    %1818 = vmatpush.msra.mxu0 0.0
    %v1819 = vand.u32 %v1102, 4294901760
    %v1820 = vsub.f32 %v1102, %v1819
    %1821 = vmatpush.msra.mxu0 %v1820
    %v1822 = vand.u32 %v1098, 4294901760
    %v1823 = vsub.f32 %v1098, %v1822
    %1824 = vmatpush.msra.mxu0 %v1823
    %v1825 = vand.u32 %v1094, 4294901760
    %v1826 = vsub.f32 %v1094, %v1825
    %1827 = vmatpush.msra.mxu0 %v1826
    %v1828 = vand.u32 %v1090, 4294901760
    %v1829 = vsub.f32 %v1090, %v1828
    %1830 = vmatpush.msra.mxu0 %v1829
    %v1831 = vand.u32 %v1134, 4294901760
    %v1832 = vsub.f32 %v1134, %v1831
    %1833 = vmatmul.f32.gmra.mxu0 %v1832
    %v1834 = vpop.f32.mrf.mxu0
    %v1835 = vadd.f32 %v1793, %v1834
    %v1836 = vand.u32 %v1137, 4294901760
    %v1837 = vsub.f32 %v1137, %v1836
    %1838 = vmatmul.f32.gmra.mxu0 %v1837
    %v1839 = vpop.f32.mrf.mxu0
    %v1840 = vadd.f32 %v1797, %v1839
    %v1841 = vand.u32 %v1140, 4294901760
    %v1842 = vsub.f32 %v1140, %v1841
    %1843 = vmatmul.f32.gmra.mxu0 %v1842
    %v1844 = vpop.f32.mrf.mxu0
    %v1845 = vadd.f32 %v1801, %v1844
    %v1846 = vand.u32 %v1143, 4294901760
    %v1847 = vsub.f32 %v1143, %v1846
    %1848 = vmatmul.f32.gmra.mxu0 %v1847
    %v1849 = vpop.f32.mrf.mxu0
    %v1850 = vadd.f32 %v1805, %v1849
    %1851 = vdwg.mxu0
    %1852 = vmatpush.msra.mxu0 0.0
    %1853 = vmatpush.msra.mxu0 0.0
    %1854 = vmatpush.msra.mxu0 0.0
    %1855 = vmatpush.msra.mxu0 0.0
    %1856 = vmatpush.msra.mxu0 0.0
    %1857 = vmatpush.msra.mxu0 0.0
    %1858 = vmatpush.msra.mxu0 0.0
    %1859 = vmatpush.msra.mxu0 0.0
    %1860 = vmatpush.msra.mxu0 0.0
    %1861 = vmatpush.msra.mxu0 0.0
    %1862 = vmatpush.msra.mxu0 0.0
    %1863 = vmatpush.msra.mxu0 0.0
    %v1864 = vand.u32 %v1102, 4294901760
    %1865 = vmatpush.msra.mxu0 %v1864
    %v1866 = vand.u32 %v1098, 4294901760
    %1867 = vmatpush.msra.mxu0 %v1866
    %v1868 = vand.u32 %v1094, 4294901760
    %1869 = vmatpush.msra.mxu0 %v1868
    %v1870 = vand.u32 %v1090, 4294901760
    %1871 = vmatpush.msra.mxu0 %v1870
    %v1872 = vand.u32 %v1134, 4294901760
    %v1873 = vsub.f32 %v1134, %v1872
    %v1874 = vand.u32 %v1873, 4294901760
    %1875 = vmatmul.f32.gmra.mxu0 %v1874
    %v1876 = vpop.f32.mrf.mxu0
    %v1877 = vadd.f32 %v1835, %v1876
    %v1878 = vand.u32 %v1137, 4294901760
    %v1879 = vsub.f32 %v1137, %v1878
    %v1880 = vand.u32 %v1879, 4294901760
    %1881 = vmatmul.f32.gmra.mxu0 %v1880
    %v1882 = vpop.f32.mrf.mxu0
    %v1883 = vadd.f32 %v1840, %v1882
    %v1884 = vand.u32 %v1140, 4294901760
    %v1885 = vsub.f32 %v1140, %v1884
    %v1886 = vand.u32 %v1885, 4294901760
    %1887 = vmatmul.f32.gmra.mxu0 %v1886
    %v1888 = vpop.f32.mrf.mxu0
    %v1889 = vadd.f32 %v1845, %v1888
    %v1890 = vand.u32 %v1143, 4294901760
    %v1891 = vsub.f32 %v1143, %v1890
    %v1892 = vand.u32 %v1891, 4294901760
    %1893 = vmatmul.f32.gmra.mxu0 %v1892
    %v1894 = vpop.f32.mrf.mxu0
    %v1895 = vadd.f32 %v1850, %v1894
    %1896 = vdwg.mxu0
    %1897 = vmatpush.msra.mxu0 0.0
    %1898 = vmatpush.msra.mxu0 0.0
    %1899 = vmatpush.msra.mxu0 0.0
    %1900 = vmatpush.msra.mxu0 0.0
    %1901 = vmatpush.msra.mxu0 0.0
    %1902 = vmatpush.msra.mxu0 0.0
    %1903 = vmatpush.msra.mxu0 0.0
    %1904 = vmatpush.msra.mxu0 0.0
    %1905 = vmatpush.msra.mxu0 0.0
    %1906 = vmatpush.msra.mxu0 0.0
    %1907 = vmatpush.msra.mxu0 0.0
    %1908 = vmatpush.msra.mxu0 0.0
    %v1909 = vand.u32 %v1102, 4294901760
    %v1910 = vsub.f32 %v1102, %v1909
    %v1911 = vand.u32 %v1910, 4294901760
    %1912 = vmatpush.msra.mxu0 %v1911
    %v1913 = vand.u32 %v1098, 4294901760
    %v1914 = vsub.f32 %v1098, %v1913
    %v1915 = vand.u32 %v1914, 4294901760
    %1916 = vmatpush.msra.mxu0 %v1915
    %v1917 = vand.u32 %v1094, 4294901760
    %v1918 = vsub.f32 %v1094, %v1917
    %v1919 = vand.u32 %v1918, 4294901760
    %1920 = vmatpush.msra.mxu0 %v1919
    %v1921 = vand.u32 %v1090, 4294901760
    %v1922 = vsub.f32 %v1090, %v1921
    %v1923 = vand.u32 %v1922, 4294901760
    %1924 = vmatpush.msra.mxu0 %v1923
    %v1925 = vand.u32 %v1134, 4294901760
    %1926 = vmatmul.f32.gmra.mxu0 %v1925
    %v1927 = vpop.f32.mrf.mxu0
    %v1928 = vadd.f32 %v1877, %v1927
    %v1929 = vand.u32 %v1137, 4294901760
    %1930 = vmatmul.f32.gmra.mxu0 %v1929
    %v1931 = vpop.f32.mrf.mxu0
    %v1932 = vadd.f32 %v1883, %v1931
    %v1933 = vand.u32 %v1140, 4294901760
    %1934 = vmatmul.f32.gmra.mxu0 %v1933
    %v1935 = vpop.f32.mrf.mxu0
    %v1936 = vadd.f32 %v1889, %v1935
    %v1937 = vand.u32 %v1143, 4294901760
    %1938 = vmatmul.f32.gmra.mxu0 %v1937
    %v1939 = vpop.f32.mrf.mxu0
    %v1940 = vadd.f32 %v1895, %v1939
    %1941 = vdwg.mxu0
    %1942 = vmatpush.msra.mxu0 0.0
    %1943 = vmatpush.msra.mxu0 0.0
    %1944 = vmatpush.msra.mxu0 0.0
    %1945 = vmatpush.msra.mxu0 0.0
    %1946 = vmatpush.msra.mxu0 0.0
    %1947 = vmatpush.msra.mxu0 0.0
    %1948 = vmatpush.msra.mxu0 0.0
    %1949 = vmatpush.msra.mxu0 0.0
    %1950 = vmatpush.msra.mxu0 0.0
    %1951 = vmatpush.msra.mxu0 0.0
    %1952 = vmatpush.msra.mxu0 0.0
    %1953 = vmatpush.msra.mxu0 0.0
    %v1954 = vand.u32 %v1102, 4294901760
    %1955 = vmatpush.msra.mxu0 %v1954
    %v1956 = vand.u32 %v1098, 4294901760
    %1957 = vmatpush.msra.mxu0 %v1956
    %v1958 = vand.u32 %v1094, 4294901760
    %1959 = vmatpush.msra.mxu0 %v1958
    %v1960 = vand.u32 %v1090, 4294901760
    %1961 = vmatpush.msra.mxu0 %v1960
    %v1962 = vand.u32 %v1134, 4294901760
    %1963 = vmatmul.f32.gmra.mxu0 %v1962
    %v1964 = vpop.f32.mrf.mxu0
    %v1965 = vadd.f32 %v1928, %v1964
    %v1966 = vand.u32 %v1137, 4294901760
    %1967 = vmatmul.f32.gmra.mxu0 %v1966
    %v1968 = vpop.f32.mrf.mxu0
    %v1969 = vadd.f32 %v1932, %v1968
    %v1970 = vand.u32 %v1140, 4294901760
    %1971 = vmatmul.f32.gmra.mxu0 %v1970
    %v1972 = vpop.f32.mrf.mxu0
    %v1973 = vadd.f32 %v1936, %v1972
    %v1974 = vand.u32 %v1143, 4294901760
    %1975 = vmatmul.f32.gmra.mxu0 %v1974
    %v1976 = vpop.f32.mrf.mxu0
    %v1977 = vadd.f32 %v1940, %v1976
    %1978 = vdwg.mxu0
    %1979 = vmatpush.msra.mxu0 0.0
    %1980 = vmatpush.msra.mxu0 0.0
    %1981 = vmatpush.msra.mxu0 0.0
    %1982 = vmatpush.msra.mxu0 0.0
    %1983 = vmatpush.msra.mxu0 0.0
    %1984 = vmatpush.msra.mxu0 0.0
    %1985 = vmatpush.msra.mxu0 0.0
    %1986 = vmatpush.msra.mxu0 0.0
    %1987 = vmatpush.msra.mxu0 0.0
    %1988 = vmatpush.msra.mxu0 0.0
    %1989 = vmatpush.msra.mxu0 0.0
    %1990 = vmatpush.msra.mxu0 0.0
    %v1991 = vand.u32 %v1103, 4294901760
    %1992 = vmatpush.msra.mxu0 %v1991
    %v1993 = vand.u32 %v1099, 4294901760
    %1994 = vmatpush.msra.mxu0 %v1993
    %v1995 = vand.u32 %v1095, 4294901760
    %1996 = vmatpush.msra.mxu0 %v1995
    %v1997 = vand.u32 %v1091, 4294901760
    %1998 = vmatpush.msra.mxu0 %v1997
    %v1999 = vand.u32 %v1134, 4294901760
    %v2000 = vsub.f32 %v1134, %v1999
    %v2001 = vand.u32 %v2000, 4294901760
    %v2002 = vsub.f32 %v2000, %v2001
    %v2003 = vand.u32 %v2002, 4294901760
    %2004 = vmatmul.f32.gmra.mxu0 %v2003
    %v2005 = vpop.f32.mrf.mxu0
    %v2006 = vadd.f32 %v1115, %v2005
    %v2007 = vand.u32 %v1137, 4294901760
    %v2008 = vsub.f32 %v1137, %v2007
    %v2009 = vand.u32 %v2008, 4294901760
    %v2010 = vsub.f32 %v2008, %v2009
    %v2011 = vand.u32 %v2010, 4294901760
    %2012 = vmatmul.f32.gmra.mxu0 %v2011
    %v2013 = vpop.f32.mrf.mxu0
    %v2014 = vadd.f32 %v1120, %v2013
    %v2015 = vand.u32 %v1140, 4294901760
    %v2016 = vsub.f32 %v1140, %v2015
    %v2017 = vand.u32 %v2016, 4294901760
    %v2018 = vsub.f32 %v2016, %v2017
    %v2019 = vand.u32 %v2018, 4294901760
    %2020 = vmatmul.f32.gmra.mxu0 %v2019
    %v2021 = vpop.f32.mrf.mxu0
    %v2022 = vadd.f32 %v1125, %v2021
    %v2023 = vand.u32 %v1143, 4294901760
    %v2024 = vsub.f32 %v1143, %v2023
    %v2025 = vand.u32 %v2024, 4294901760
    %v2026 = vsub.f32 %v2024, %v2025
    %v2027 = vand.u32 %v2026, 4294901760
    %2028 = vmatmul.f32.gmra.mxu0 %v2027
    %v2029 = vpop.f32.mrf.mxu0
    %v2030 = vadd.f32 %v1130, %v2029
    %2031 = vdwg.mxu0
    %2032 = vmatpush.msra.mxu0 0.0
    %2033 = vmatpush.msra.mxu0 0.0
    %2034 = vmatpush.msra.mxu0 0.0
    %2035 = vmatpush.msra.mxu0 0.0
    %2036 = vmatpush.msra.mxu0 0.0
    %2037 = vmatpush.msra.mxu0 0.0
    %2038 = vmatpush.msra.mxu0 0.0
    %2039 = vmatpush.msra.mxu0 0.0
    %2040 = vmatpush.msra.mxu0 0.0
    %2041 = vmatpush.msra.mxu0 0.0
    %2042 = vmatpush.msra.mxu0 0.0
    %2043 = vmatpush.msra.mxu0 0.0
    %v2044 = vand.u32 %v1103, 4294901760
    %v2045 = vsub.f32 %v1103, %v2044
    %v2046 = vand.u32 %v2045, 4294901760
    %v2047 = vsub.f32 %v2045, %v2046
    %v2048 = vand.u32 %v2047, 4294901760
    %2049 = vmatpush.msra.mxu0 %v2048
    %v2050 = vand.u32 %v1099, 4294901760
    %v2051 = vsub.f32 %v1099, %v2050
    %v2052 = vand.u32 %v2051, 4294901760
    %v2053 = vsub.f32 %v2051, %v2052
    %v2054 = vand.u32 %v2053, 4294901760
    %2055 = vmatpush.msra.mxu0 %v2054
    %v2056 = vand.u32 %v1095, 4294901760
    %v2057 = vsub.f32 %v1095, %v2056
    %v2058 = vand.u32 %v2057, 4294901760
    %v2059 = vsub.f32 %v2057, %v2058
    %v2060 = vand.u32 %v2059, 4294901760
    %2061 = vmatpush.msra.mxu0 %v2060
    %v2062 = vand.u32 %v1091, 4294901760
    %v2063 = vsub.f32 %v1091, %v2062
    %v2064 = vand.u32 %v2063, 4294901760
    %v2065 = vsub.f32 %v2063, %v2064
    %v2066 = vand.u32 %v2065, 4294901760
    %2067 = vmatpush.msra.mxu0 %v2066
    %v2068 = vand.u32 %v1134, 4294901760
    %2069 = vmatmul.f32.gmra.mxu0 %v2068
    %v2070 = vpop.f32.mrf.mxu0
    %v2071 = vadd.f32 %v2006, %v2070
    %v2072 = vand.u32 %v1137, 4294901760
    %2073 = vmatmul.f32.gmra.mxu0 %v2072
    %v2074 = vpop.f32.mrf.mxu0
    %v2075 = vadd.f32 %v2014, %v2074
    %v2076 = vand.u32 %v1140, 4294901760
    %2077 = vmatmul.f32.gmra.mxu0 %v2076
    %v2078 = vpop.f32.mrf.mxu0
    %v2079 = vadd.f32 %v2022, %v2078
    %v2080 = vand.u32 %v1143, 4294901760
    %2081 = vmatmul.f32.gmra.mxu0 %v2080
    %v2082 = vpop.f32.mrf.mxu0
    %v2083 = vadd.f32 %v2030, %v2082
    %2084 = vdwg.mxu0
    %2085 = vmatpush.msra.mxu0 0.0
    %2086 = vmatpush.msra.mxu0 0.0
    %2087 = vmatpush.msra.mxu0 0.0
    %2088 = vmatpush.msra.mxu0 0.0
    %2089 = vmatpush.msra.mxu0 0.0
    %2090 = vmatpush.msra.mxu0 0.0
    %2091 = vmatpush.msra.mxu0 0.0
    %2092 = vmatpush.msra.mxu0 0.0
    %2093 = vmatpush.msra.mxu0 0.0
    %2094 = vmatpush.msra.mxu0 0.0
    %2095 = vmatpush.msra.mxu0 0.0
    %2096 = vmatpush.msra.mxu0 0.0
    %v2097 = vand.u32 %v1103, 4294901760
    %v2098 = vsub.f32 %v1103, %v2097
    %2099 = vmatpush.msra.mxu0 %v2098
    %v2100 = vand.u32 %v1099, 4294901760
    %v2101 = vsub.f32 %v1099, %v2100
    %2102 = vmatpush.msra.mxu0 %v2101
    %v2103 = vand.u32 %v1095, 4294901760
    %v2104 = vsub.f32 %v1095, %v2103
    %2105 = vmatpush.msra.mxu0 %v2104
    %v2106 = vand.u32 %v1091, 4294901760
    %v2107 = vsub.f32 %v1091, %v2106
    %2108 = vmatpush.msra.mxu0 %v2107
    %v2109 = vand.u32 %v1134, 4294901760
    %v2110 = vsub.f32 %v1134, %v2109
    %2111 = vmatmul.f32.gmra.mxu0 %v2110
    %v2112 = vpop.f32.mrf.mxu0
    %v2113 = vadd.f32 %v2071, %v2112
    %v2114 = vand.u32 %v1137, 4294901760
    %v2115 = vsub.f32 %v1137, %v2114
    %2116 = vmatmul.f32.gmra.mxu0 %v2115
    %v2117 = vpop.f32.mrf.mxu0
    %v2118 = vadd.f32 %v2075, %v2117
    %v2119 = vand.u32 %v1140, 4294901760
    %v2120 = vsub.f32 %v1140, %v2119
    %2121 = vmatmul.f32.gmra.mxu0 %v2120
    %v2122 = vpop.f32.mrf.mxu0
    %v2123 = vadd.f32 %v2079, %v2122
    %v2124 = vand.u32 %v1143, 4294901760
    %v2125 = vsub.f32 %v1143, %v2124
    %2126 = vmatmul.f32.gmra.mxu0 %v2125
    %v2127 = vpop.f32.mrf.mxu0
    %v2128 = vadd.f32 %v2083, %v2127
    %2129 = vdwg.mxu0
    %2130 = vmatpush.msra.mxu0 0.0
    %2131 = vmatpush.msra.mxu0 0.0
    %2132 = vmatpush.msra.mxu0 0.0
    %2133 = vmatpush.msra.mxu0 0.0
    %2134 = vmatpush.msra.mxu0 0.0
    %2135 = vmatpush.msra.mxu0 0.0
    %2136 = vmatpush.msra.mxu0 0.0
    %2137 = vmatpush.msra.mxu0 0.0
    %2138 = vmatpush.msra.mxu0 0.0
    %2139 = vmatpush.msra.mxu0 0.0
    %2140 = vmatpush.msra.mxu0 0.0
    %2141 = vmatpush.msra.mxu0 0.0
    %v2142 = vand.u32 %v1103, 4294901760
    %2143 = vmatpush.msra.mxu0 %v2142
    %v2144 = vand.u32 %v1099, 4294901760
    %2145 = vmatpush.msra.mxu0 %v2144
    %v2146 = vand.u32 %v1095, 4294901760
    %2147 = vmatpush.msra.mxu0 %v2146
    %v2148 = vand.u32 %v1091, 4294901760
    %2149 = vmatpush.msra.mxu0 %v2148
    %v2150 = vand.u32 %v1134, 4294901760
    %v2151 = vsub.f32 %v1134, %v2150
    %v2152 = vand.u32 %v2151, 4294901760
    %2153 = vmatmul.f32.gmra.mxu0 %v2152
    %v2154 = vpop.f32.mrf.mxu0
    %v2155 = vadd.f32 %v2113, %v2154
    %v2156 = vand.u32 %v1137, 4294901760
    %v2157 = vsub.f32 %v1137, %v2156
    %v2158 = vand.u32 %v2157, 4294901760
    %2159 = vmatmul.f32.gmra.mxu0 %v2158
    %v2160 = vpop.f32.mrf.mxu0
    %v2161 = vadd.f32 %v2118, %v2160
    %v2162 = vand.u32 %v1140, 4294901760
    %v2163 = vsub.f32 %v1140, %v2162
    %v2164 = vand.u32 %v2163, 4294901760
    %2165 = vmatmul.f32.gmra.mxu0 %v2164
    %v2166 = vpop.f32.mrf.mxu0
    %v2167 = vadd.f32 %v2123, %v2166
    %v2168 = vand.u32 %v1143, 4294901760
    %v2169 = vsub.f32 %v1143, %v2168
    %v2170 = vand.u32 %v2169, 4294901760
    %2171 = vmatmul.f32.gmra.mxu0 %v2170
    %v2172 = vpop.f32.mrf.mxu0
    %v2173 = vadd.f32 %v2128, %v2172
    %2174 = vdwg.mxu0
    %2175 = vmatpush.msra.mxu0 0.0
    %2176 = vmatpush.msra.mxu0 0.0
    %2177 = vmatpush.msra.mxu0 0.0
    %2178 = vmatpush.msra.mxu0 0.0
    %2179 = vmatpush.msra.mxu0 0.0
    %2180 = vmatpush.msra.mxu0 0.0
    %2181 = vmatpush.msra.mxu0 0.0
    %2182 = vmatpush.msra.mxu0 0.0
    %2183 = vmatpush.msra.mxu0 0.0
    %2184 = vmatpush.msra.mxu0 0.0
    %2185 = vmatpush.msra.mxu0 0.0
    %2186 = vmatpush.msra.mxu0 0.0
    %v2187 = vand.u32 %v1103, 4294901760
    %v2188 = vsub.f32 %v1103, %v2187
    %v2189 = vand.u32 %v2188, 4294901760
    %2190 = vmatpush.msra.mxu0 %v2189
    %v2191 = vand.u32 %v1099, 4294901760
    %v2192 = vsub.f32 %v1099, %v2191
    %v2193 = vand.u32 %v2192, 4294901760
    %2194 = vmatpush.msra.mxu0 %v2193
    %v2195 = vand.u32 %v1095, 4294901760
    %v2196 = vsub.f32 %v1095, %v2195
    %v2197 = vand.u32 %v2196, 4294901760
    %2198 = vmatpush.msra.mxu0 %v2197
    %v2199 = vand.u32 %v1091, 4294901760
    %v2200 = vsub.f32 %v1091, %v2199
    %v2201 = vand.u32 %v2200, 4294901760
    %2202 = vmatpush.msra.mxu0 %v2201
    %v2203 = vand.u32 %v1134, 4294901760
    %2204 = vmatmul.f32.gmra.mxu0 %v2203
    %v2205 = vpop.f32.mrf.mxu0
    %v2206 = vadd.f32 %v2155, %v2205
    %v2207 = vand.u32 %v1137, 4294901760
    %2208 = vmatmul.f32.gmra.mxu0 %v2207
    %v2209 = vpop.f32.mrf.mxu0
    %v2210 = vadd.f32 %v2161, %v2209
    %v2211 = vand.u32 %v1140, 4294901760
    %2212 = vmatmul.f32.gmra.mxu0 %v2211
    %v2213 = vpop.f32.mrf.mxu0
    %v2214 = vadd.f32 %v2167, %v2213
    %v2215 = vand.u32 %v1143, 4294901760
    %2216 = vmatmul.f32.gmra.mxu0 %v2215
    %v2217 = vpop.f32.mrf.mxu0
    %v2218 = vadd.f32 %v2173, %v2217
    %2219 = vdwg.mxu0
    %2220 = vmatpush.msra.mxu0 0.0
    %2221 = vmatpush.msra.mxu0 0.0
    %2222 = vmatpush.msra.mxu0 0.0
    %2223 = vmatpush.msra.mxu0 0.0
    %2224 = vmatpush.msra.mxu0 0.0
    %2225 = vmatpush.msra.mxu0 0.0
    %2226 = vmatpush.msra.mxu0 0.0
    %2227 = vmatpush.msra.mxu0 0.0
    %2228 = vmatpush.msra.mxu0 0.0
    %2229 = vmatpush.msra.mxu0 0.0
    %2230 = vmatpush.msra.mxu0 0.0
    %2231 = vmatpush.msra.mxu0 0.0
    %v2232 = vand.u32 %v1103, 4294901760
    %2233 = vmatpush.msra.mxu0 %v2232
    %v2234 = vand.u32 %v1099, 4294901760
    %2235 = vmatpush.msra.mxu0 %v2234
    %v2236 = vand.u32 %v1095, 4294901760
    %2237 = vmatpush.msra.mxu0 %v2236
    %v2238 = vand.u32 %v1091, 4294901760
    %2239 = vmatpush.msra.mxu0 %v2238
    %v2240 = vand.u32 %v1134, 4294901760
    %2241 = vmatmul.f32.gmra.mxu0 %v2240
    %v2242 = vpop.f32.mrf.mxu0
    %v2243 = vadd.f32 %v2206, %v2242
    %v2244 = vand.u32 %v1137, 4294901760
    %2245 = vmatmul.f32.gmra.mxu0 %v2244
    %v2246 = vpop.f32.mrf.mxu0
    %v2247 = vadd.f32 %v2210, %v2246
    %v2248 = vand.u32 %v1140, 4294901760
    %2249 = vmatmul.f32.gmra.mxu0 %v2248
    %v2250 = vpop.f32.mrf.mxu0
    %v2251 = vadd.f32 %v2214, %v2250
    %v2252 = vand.u32 %v1143, 4294901760
    %2253 = vmatmul.f32.gmra.mxu0 %v2252
    %v2254 = vpop.f32.mrf.mxu0
    %v2255 = vadd.f32 %v2218, %v2254
    %2256 = vdwg.mxu0
    %v2257 = vmul.f32 %v1409, 0.5
    %v2258 = vmul.f32 %v1687, 0.5
    %v2259 = vmul.f32 %v1965, 0.5
    %v2260 = vmul.f32 %v2243, 0.5
    %v2261 = vmul.f32 %v1413, 0.5
    %v2262 = vmul.f32 %v1691, 0.5
    %v2263 = vmul.f32 %v1969, 0.5
    %v2264 = vmul.f32 %v2247, 0.5
    %v2265 = vmul.f32 %v1417, 0.5
    %v2266 = vmul.f32 %v1695, 0.5
    %v2267 = vmul.f32 %v1973, 0.5
    %v2268 = vmul.f32 %v2251, 0.5
    %v2269 = vmul.f32 %v1421, 0.5
    %v2270 = vmul.f32 %v1699, 0.5
    %v2271 = vmul.f32 %v1977, 0.5
    %v2272 = vmul.f32 %v2255, 0.5
    %v2273 = vtanh.pop %v2257
    %v2274 = vtanh.pop %v2258
    %v2275 = vtanh.pop %v2259
    %v2276 = vtanh.pop %v2260
    %v2277 = vtanh.pop %v2261
    %v2278 = vtanh.pop %v2262
    %v2279 = vtanh.pop %v2263
    %v2280 = vtanh.pop %v2264
    %v2281 = vtanh.pop %v2265
    %v2282 = vtanh.pop %v2266
    %v2283 = vtanh.pop %v2267
    %v2284 = vtanh.pop %v2268
    %v2285 = vtanh.pop %v2269
    %v2286 = vtanh.pop %v2270
    %v2287 = vtanh.pop %v2271
    %v2288 = vtanh.pop %v2272
    %v2289 = vmul.f32 %v2273, 0.5
    %v2290 = vmul.f32 %v2274, 0.5
    %v2291 = vmul.f32 %v2275, 0.5
    %v2292 = vmul.f32 %v2276, 0.5
    %v2293 = vmul.f32 %v2277, 0.5
    %v2294 = vmul.f32 %v2278, 0.5
    %v2295 = vmul.f32 %v2279, 0.5
    %v2296 = vmul.f32 %v2280, 0.5
    %v2297 = vmul.f32 %v2281, 0.5
    %v2298 = vmul.f32 %v2282, 0.5
    %v2299 = vmul.f32 %v2283, 0.5
    %v2300 = vmul.f32 %v2284, 0.5
    %v2301 = vmul.f32 %v2285, 0.5
    %v2302 = vmul.f32 %v2286, 0.5
    %v2303 = vmul.f32 %v2287, 0.5
    %v2304 = vmul.f32 %v2288, 0.5
    %v2305 = vadd.f32 %v2289, 0.5
    %v2306 = vadd.f32 %v2290, 0.5
    %v2307 = vadd.f32 %v2291, 0.5
    %v2308 = vadd.f32 %v2292, 0.5
    %v2309 = vadd.f32 %v2293, 0.5
    %v2310 = vadd.f32 %v2294, 0.5
    %v2311 = vadd.f32 %v2295, 0.5
    %v2312 = vadd.f32 %v2296, 0.5
    %v2313 = vadd.f32 %v2297, 0.5
    %v2314 = vadd.f32 %v2298, 0.5
    %v2315 = vadd.f32 %v2299, 0.5
    %v2316 = vadd.f32 %v2300, 0.5
    %v2317 = vadd.f32 %v2301, 0.5
    %v2318 = vadd.f32 %v2302, 0.5
    %v2319 = vadd.f32 %v2303, 0.5
    %v2320 = vadd.f32 %v2304, 0.5
    %v2321 = vld [vmem:[%s5] sm:$0xf]
    %v2322 = vld [vmem:[%s6] sm:$0xf]
    %2324 = vset.pattern.permute.xlu0 0
    %2325 = vperm.xlu0 %2324, %v2322
    %v2326 = vpop.permute.xlu0 %2325
    %v2329 = vsel %vm1132, %v2321, 0
    %2331 = vmatpush.msra.mxu0 0.0
    %2332 = vmatpush.msra.mxu0 0.0
    %2333 = vmatpush.msra.mxu0 0.0
    %2334 = vmatpush.msra.mxu0 0.0
    %2335 = vmatpush.msra.mxu0 0.0
    %2336 = vmatpush.msra.mxu0 0.0
    %2337 = vmatpush.msra.mxu0 0.0
    %2338 = vmatpush.msra.mxu0 0.0
    %2339 = vmatpush.msra.mxu0 0.0
    %2340 = vmatpush.msra.mxu0 0.0
    %2341 = vmatpush.msra.mxu0 0.0
    %2342 = vmatpush.msra.mxu0 0.0
    %v2343 = vand.u32 %v2317, 4294901760
    %2344 = vmatpush.msra.mxu0 %v2343
    %v2345 = vand.u32 %v2313, 4294901760
    %2346 = vmatpush.msra.mxu0 %v2345
    %v2347 = vand.u32 %v2309, 4294901760
    %2348 = vmatpush.msra.mxu0 %v2347
    %v2349 = vand.u32 %v2305, 4294901760
    %2350 = vmatpush.msra.mxu0 %v2349
    %v2351 = vand.u32 %v2329, 4294901760
    %v2352 = vsub.f32 %v2329, %v2351
    %v2353 = vand.u32 %v2352, 4294901760
    %v2354 = vsub.f32 %v2352, %v2353
    %v2355 = vand.u32 %v2354, 4294901760
    %2356 = vmatmul.f32.gmra.mxu0 %v2355
    %v2357 = vpop.f32.mrf.mxu0
    %v2358 = vadd.f32 %v2326, %v2357
    %2359 = vdwg.mxu0
    %2360 = vmatpush.msra.mxu0 0.0
    %2361 = vmatpush.msra.mxu0 0.0
    %2362 = vmatpush.msra.mxu0 0.0
    %2363 = vmatpush.msra.mxu0 0.0
    %2364 = vmatpush.msra.mxu0 0.0
    %2365 = vmatpush.msra.mxu0 0.0
    %2366 = vmatpush.msra.mxu0 0.0
    %2367 = vmatpush.msra.mxu0 0.0
    %2368 = vmatpush.msra.mxu0 0.0
    %2369 = vmatpush.msra.mxu0 0.0
    %2370 = vmatpush.msra.mxu0 0.0
    %2371 = vmatpush.msra.mxu0 0.0
    %v2372 = vand.u32 %v2317, 4294901760
    %v2373 = vsub.f32 %v2317, %v2372
    %v2374 = vand.u32 %v2373, 4294901760
    %v2375 = vsub.f32 %v2373, %v2374
    %v2376 = vand.u32 %v2375, 4294901760
    %2377 = vmatpush.msra.mxu0 %v2376
    %v2378 = vand.u32 %v2313, 4294901760
    %v2379 = vsub.f32 %v2313, %v2378
    %v2380 = vand.u32 %v2379, 4294901760
    %v2381 = vsub.f32 %v2379, %v2380
    %v2382 = vand.u32 %v2381, 4294901760
    %2383 = vmatpush.msra.mxu0 %v2382
    %v2384 = vand.u32 %v2309, 4294901760
    %v2385 = vsub.f32 %v2309, %v2384
    %v2386 = vand.u32 %v2385, 4294901760
    %v2387 = vsub.f32 %v2385, %v2386
    %v2388 = vand.u32 %v2387, 4294901760
    %2389 = vmatpush.msra.mxu0 %v2388
    %v2390 = vand.u32 %v2305, 4294901760
    %v2391 = vsub.f32 %v2305, %v2390
    %v2392 = vand.u32 %v2391, 4294901760
    %v2393 = vsub.f32 %v2391, %v2392
    %v2394 = vand.u32 %v2393, 4294901760
    %2395 = vmatpush.msra.mxu0 %v2394
    %v2396 = vand.u32 %v2329, 4294901760
    %2397 = vmatmul.f32.gmra.mxu0 %v2396
    %v2398 = vpop.f32.mrf.mxu0
    %v2399 = vadd.f32 %v2358, %v2398
    %2400 = vdwg.mxu0
    %2401 = vmatpush.msra.mxu0 0.0
    %2402 = vmatpush.msra.mxu0 0.0
    %2403 = vmatpush.msra.mxu0 0.0
    %2404 = vmatpush.msra.mxu0 0.0
    %2405 = vmatpush.msra.mxu0 0.0
    %2406 = vmatpush.msra.mxu0 0.0
    %2407 = vmatpush.msra.mxu0 0.0
    %2408 = vmatpush.msra.mxu0 0.0
    %2409 = vmatpush.msra.mxu0 0.0
    %2410 = vmatpush.msra.mxu0 0.0
    %2411 = vmatpush.msra.mxu0 0.0
    %2412 = vmatpush.msra.mxu0 0.0
    %v2413 = vand.u32 %v2317, 4294901760
    %v2414 = vsub.f32 %v2317, %v2413
    %2415 = vmatpush.msra.mxu0 %v2414
    %v2416 = vand.u32 %v2313, 4294901760
    %v2417 = vsub.f32 %v2313, %v2416
    %2418 = vmatpush.msra.mxu0 %v2417
    %v2419 = vand.u32 %v2309, 4294901760
    %v2420 = vsub.f32 %v2309, %v2419
    %2421 = vmatpush.msra.mxu0 %v2420
    %v2422 = vand.u32 %v2305, 4294901760
    %v2423 = vsub.f32 %v2305, %v2422
    %2424 = vmatpush.msra.mxu0 %v2423
    %v2425 = vand.u32 %v2329, 4294901760
    %v2426 = vsub.f32 %v2329, %v2425
    %2427 = vmatmul.f32.gmra.mxu0 %v2426
    %v2428 = vpop.f32.mrf.mxu0
    %v2429 = vadd.f32 %v2399, %v2428
    %2430 = vdwg.mxu0
    %2431 = vmatpush.msra.mxu0 0.0
    %2432 = vmatpush.msra.mxu0 0.0
    %2433 = vmatpush.msra.mxu0 0.0
    %2434 = vmatpush.msra.mxu0 0.0
    %2435 = vmatpush.msra.mxu0 0.0
    %2436 = vmatpush.msra.mxu0 0.0
    %2437 = vmatpush.msra.mxu0 0.0
    %2438 = vmatpush.msra.mxu0 0.0
    %2439 = vmatpush.msra.mxu0 0.0
    %2440 = vmatpush.msra.mxu0 0.0
    %2441 = vmatpush.msra.mxu0 0.0
    %2442 = vmatpush.msra.mxu0 0.0
    %v2443 = vand.u32 %v2317, 4294901760
    %2444 = vmatpush.msra.mxu0 %v2443
    %v2445 = vand.u32 %v2313, 4294901760
    %2446 = vmatpush.msra.mxu0 %v2445
    %v2447 = vand.u32 %v2309, 4294901760
    %2448 = vmatpush.msra.mxu0 %v2447
    %v2449 = vand.u32 %v2305, 4294901760
    %2450 = vmatpush.msra.mxu0 %v2449
    %v2451 = vand.u32 %v2329, 4294901760
    %v2452 = vsub.f32 %v2329, %v2451
    %v2453 = vand.u32 %v2452, 4294901760
    %2454 = vmatmul.f32.gmra.mxu0 %v2453
    %v2455 = vpop.f32.mrf.mxu0
    %v2456 = vadd.f32 %v2429, %v2455
    %2457 = vdwg.mxu0
    %2458 = vmatpush.msra.mxu0 0.0
    %2459 = vmatpush.msra.mxu0 0.0
    %2460 = vmatpush.msra.mxu0 0.0
    %2461 = vmatpush.msra.mxu0 0.0
    %2462 = vmatpush.msra.mxu0 0.0
    %2463 = vmatpush.msra.mxu0 0.0
    %2464 = vmatpush.msra.mxu0 0.0
    %2465 = vmatpush.msra.mxu0 0.0
    %2466 = vmatpush.msra.mxu0 0.0
    %2467 = vmatpush.msra.mxu0 0.0
    %2468 = vmatpush.msra.mxu0 0.0
    %2469 = vmatpush.msra.mxu0 0.0
    %v2470 = vand.u32 %v2317, 4294901760
    %v2471 = vsub.f32 %v2317, %v2470
    %v2472 = vand.u32 %v2471, 4294901760
    %2473 = vmatpush.msra.mxu0 %v2472
    %v2474 = vand.u32 %v2313, 4294901760
    %v2475 = vsub.f32 %v2313, %v2474
    %v2476 = vand.u32 %v2475, 4294901760
    %2477 = vmatpush.msra.mxu0 %v2476
    %v2478 = vand.u32 %v2309, 4294901760
    %v2479 = vsub.f32 %v2309, %v2478
    %v2480 = vand.u32 %v2479, 4294901760
    %2481 = vmatpush.msra.mxu0 %v2480
    %v2482 = vand.u32 %v2305, 4294901760
    %v2483 = vsub.f32 %v2305, %v2482
    %v2484 = vand.u32 %v2483, 4294901760
    %2485 = vmatpush.msra.mxu0 %v2484
    %v2486 = vand.u32 %v2329, 4294901760
    %2487 = vmatmul.f32.gmra.mxu0 %v2486
    %v2488 = vpop.f32.mrf.mxu0
    %v2489 = vadd.f32 %v2456, %v2488
    %2490 = vdwg.mxu0
    %2491 = vmatpush.msra.mxu0 0.0
    %2492 = vmatpush.msra.mxu0 0.0
    %2493 = vmatpush.msra.mxu0 0.0
    %2494 = vmatpush.msra.mxu0 0.0
    %2495 = vmatpush.msra.mxu0 0.0
    %2496 = vmatpush.msra.mxu0 0.0
    %2497 = vmatpush.msra.mxu0 0.0
    %2498 = vmatpush.msra.mxu0 0.0
    %2499 = vmatpush.msra.mxu0 0.0
    %2500 = vmatpush.msra.mxu0 0.0
    %2501 = vmatpush.msra.mxu0 0.0
    %2502 = vmatpush.msra.mxu0 0.0
    %v2503 = vand.u32 %v2317, 4294901760
    %2504 = vmatpush.msra.mxu0 %v2503
    %v2505 = vand.u32 %v2313, 4294901760
    %2506 = vmatpush.msra.mxu0 %v2505
    %v2507 = vand.u32 %v2309, 4294901760
    %2508 = vmatpush.msra.mxu0 %v2507
    %v2509 = vand.u32 %v2305, 4294901760
    %2510 = vmatpush.msra.mxu0 %v2509
    %v2511 = vand.u32 %v2329, 4294901760
    %2512 = vmatmul.f32.gmra.mxu0 %v2511
    %v2513 = vpop.f32.mrf.mxu0
    %v2514 = vadd.f32 %v2489, %v2513
    %2515 = vdwg.mxu0
    %2516 = vmatpush.msra.mxu0 0.0
    %2517 = vmatpush.msra.mxu0 0.0
    %2518 = vmatpush.msra.mxu0 0.0
    %2519 = vmatpush.msra.mxu0 0.0
    %2520 = vmatpush.msra.mxu0 0.0
    %2521 = vmatpush.msra.mxu0 0.0
    %2522 = vmatpush.msra.mxu0 0.0
    %2523 = vmatpush.msra.mxu0 0.0
    %2524 = vmatpush.msra.mxu0 0.0
    %2525 = vmatpush.msra.mxu0 0.0
    %2526 = vmatpush.msra.mxu0 0.0
    %2527 = vmatpush.msra.mxu0 0.0
    %v2528 = vand.u32 %v2318, 4294901760
    %2529 = vmatpush.msra.mxu0 %v2528
    %v2530 = vand.u32 %v2314, 4294901760
    %2531 = vmatpush.msra.mxu0 %v2530
    %v2532 = vand.u32 %v2310, 4294901760
    %2533 = vmatpush.msra.mxu0 %v2532
    %v2534 = vand.u32 %v2306, 4294901760
    %2535 = vmatpush.msra.mxu0 %v2534
    %v2536 = vand.u32 %v2329, 4294901760
    %v2537 = vsub.f32 %v2329, %v2536
    %v2538 = vand.u32 %v2537, 4294901760
    %v2539 = vsub.f32 %v2537, %v2538
    %v2540 = vand.u32 %v2539, 4294901760
    %2541 = vmatmul.f32.gmra.mxu0 %v2540
    %v2542 = vpop.f32.mrf.mxu0
    %v2543 = vadd.f32 %v2326, %v2542
    %2544 = vdwg.mxu0
    %2545 = vmatpush.msra.mxu0 0.0
    %2546 = vmatpush.msra.mxu0 0.0
    %2547 = vmatpush.msra.mxu0 0.0
    %2548 = vmatpush.msra.mxu0 0.0
    %2549 = vmatpush.msra.mxu0 0.0
    %2550 = vmatpush.msra.mxu0 0.0
    %2551 = vmatpush.msra.mxu0 0.0
    %2552 = vmatpush.msra.mxu0 0.0
    %2553 = vmatpush.msra.mxu0 0.0
    %2554 = vmatpush.msra.mxu0 0.0
    %2555 = vmatpush.msra.mxu0 0.0
    %2556 = vmatpush.msra.mxu0 0.0
    %v2557 = vand.u32 %v2318, 4294901760
    %v2558 = vsub.f32 %v2318, %v2557
    %v2559 = vand.u32 %v2558, 4294901760
    %v2560 = vsub.f32 %v2558, %v2559
    %v2561 = vand.u32 %v2560, 4294901760
    %2562 = vmatpush.msra.mxu0 %v2561
    %v2563 = vand.u32 %v2314, 4294901760
    %v2564 = vsub.f32 %v2314, %v2563
    %v2565 = vand.u32 %v2564, 4294901760
    %v2566 = vsub.f32 %v2564, %v2565
    %v2567 = vand.u32 %v2566, 4294901760
    %2568 = vmatpush.msra.mxu0 %v2567
    %v2569 = vand.u32 %v2310, 4294901760
    %v2570 = vsub.f32 %v2310, %v2569
    %v2571 = vand.u32 %v2570, 4294901760
    %v2572 = vsub.f32 %v2570, %v2571
    %v2573 = vand.u32 %v2572, 4294901760
    %2574 = vmatpush.msra.mxu0 %v2573
    %v2575 = vand.u32 %v2306, 4294901760
    %v2576 = vsub.f32 %v2306, %v2575
    %v2577 = vand.u32 %v2576, 4294901760
    %v2578 = vsub.f32 %v2576, %v2577
    %v2579 = vand.u32 %v2578, 4294901760
    %2580 = vmatpush.msra.mxu0 %v2579
    %v2581 = vand.u32 %v2329, 4294901760
    %2582 = vmatmul.f32.gmra.mxu0 %v2581
    %v2583 = vpop.f32.mrf.mxu0
    %v2584 = vadd.f32 %v2543, %v2583
    %2585 = vdwg.mxu0
    %2586 = vmatpush.msra.mxu0 0.0
    %2587 = vmatpush.msra.mxu0 0.0
    %2588 = vmatpush.msra.mxu0 0.0
    %2589 = vmatpush.msra.mxu0 0.0
    %2590 = vmatpush.msra.mxu0 0.0
    %2591 = vmatpush.msra.mxu0 0.0
    %2592 = vmatpush.msra.mxu0 0.0
    %2593 = vmatpush.msra.mxu0 0.0
    %2594 = vmatpush.msra.mxu0 0.0
    %2595 = vmatpush.msra.mxu0 0.0
    %2596 = vmatpush.msra.mxu0 0.0
    %2597 = vmatpush.msra.mxu0 0.0
    %v2598 = vand.u32 %v2318, 4294901760
    %v2599 = vsub.f32 %v2318, %v2598
    %2600 = vmatpush.msra.mxu0 %v2599
    %v2601 = vand.u32 %v2314, 4294901760
    %v2602 = vsub.f32 %v2314, %v2601
    %2603 = vmatpush.msra.mxu0 %v2602
    %v2604 = vand.u32 %v2310, 4294901760
    %v2605 = vsub.f32 %v2310, %v2604
    %2606 = vmatpush.msra.mxu0 %v2605
    %v2607 = vand.u32 %v2306, 4294901760
    %v2608 = vsub.f32 %v2306, %v2607
    %2609 = vmatpush.msra.mxu0 %v2608
    %v2610 = vand.u32 %v2329, 4294901760
    %v2611 = vsub.f32 %v2329, %v2610
    %2612 = vmatmul.f32.gmra.mxu0 %v2611
    %v2613 = vpop.f32.mrf.mxu0
    %v2614 = vadd.f32 %v2584, %v2613
    %2615 = vdwg.mxu0
    %2616 = vmatpush.msra.mxu0 0.0
    %2617 = vmatpush.msra.mxu0 0.0
    %2618 = vmatpush.msra.mxu0 0.0
    %2619 = vmatpush.msra.mxu0 0.0
    %2620 = vmatpush.msra.mxu0 0.0
    %2621 = vmatpush.msra.mxu0 0.0
    %2622 = vmatpush.msra.mxu0 0.0
    %2623 = vmatpush.msra.mxu0 0.0
    %2624 = vmatpush.msra.mxu0 0.0
    %2625 = vmatpush.msra.mxu0 0.0
    %2626 = vmatpush.msra.mxu0 0.0
    %2627 = vmatpush.msra.mxu0 0.0
    %v2628 = vand.u32 %v2318, 4294901760
    %2629 = vmatpush.msra.mxu0 %v2628
    %v2630 = vand.u32 %v2314, 4294901760
    %2631 = vmatpush.msra.mxu0 %v2630
    %v2632 = vand.u32 %v2310, 4294901760
    %2633 = vmatpush.msra.mxu0 %v2632
    %v2634 = vand.u32 %v2306, 4294901760
    %2635 = vmatpush.msra.mxu0 %v2634
    %v2636 = vand.u32 %v2329, 4294901760
    %v2637 = vsub.f32 %v2329, %v2636
    %v2638 = vand.u32 %v2637, 4294901760
    %2639 = vmatmul.f32.gmra.mxu0 %v2638
    %v2640 = vpop.f32.mrf.mxu0
    %v2641 = vadd.f32 %v2614, %v2640
    %2642 = vdwg.mxu0
    %2643 = vmatpush.msra.mxu0 0.0
    %2644 = vmatpush.msra.mxu0 0.0
    %2645 = vmatpush.msra.mxu0 0.0
    %2646 = vmatpush.msra.mxu0 0.0
    %2647 = vmatpush.msra.mxu0 0.0
    %2648 = vmatpush.msra.mxu0 0.0
    %2649 = vmatpush.msra.mxu0 0.0
    %2650 = vmatpush.msra.mxu0 0.0
    %2651 = vmatpush.msra.mxu0 0.0
    %2652 = vmatpush.msra.mxu0 0.0
    %2653 = vmatpush.msra.mxu0 0.0
    %2654 = vmatpush.msra.mxu0 0.0
    %v2655 = vand.u32 %v2318, 4294901760
    %v2656 = vsub.f32 %v2318, %v2655
    %v2657 = vand.u32 %v2656, 4294901760
    %2658 = vmatpush.msra.mxu0 %v2657
    %v2659 = vand.u32 %v2314, 4294901760
    %v2660 = vsub.f32 %v2314, %v2659
    %v2661 = vand.u32 %v2660, 4294901760
    %2662 = vmatpush.msra.mxu0 %v2661
    %v2663 = vand.u32 %v2310, 4294901760
    %v2664 = vsub.f32 %v2310, %v2663
    %v2665 = vand.u32 %v2664, 4294901760
    %2666 = vmatpush.msra.mxu0 %v2665
    %v2667 = vand.u32 %v2306, 4294901760
    %v2668 = vsub.f32 %v2306, %v2667
    %v2669 = vand.u32 %v2668, 4294901760
    %2670 = vmatpush.msra.mxu0 %v2669
    %v2671 = vand.u32 %v2329, 4294901760
    %2672 = vmatmul.f32.gmra.mxu0 %v2671
    %v2673 = vpop.f32.mrf.mxu0
    %v2674 = vadd.f32 %v2641, %v2673
    %2675 = vdwg.mxu0
    %2676 = vmatpush.msra.mxu0 0.0
    %2677 = vmatpush.msra.mxu0 0.0
    %2678 = vmatpush.msra.mxu0 0.0
    %2679 = vmatpush.msra.mxu0 0.0
    %2680 = vmatpush.msra.mxu0 0.0
    %2681 = vmatpush.msra.mxu0 0.0
    %2682 = vmatpush.msra.mxu0 0.0
    %2683 = vmatpush.msra.mxu0 0.0
    %2684 = vmatpush.msra.mxu0 0.0
    %2685 = vmatpush.msra.mxu0 0.0
    %2686 = vmatpush.msra.mxu0 0.0
    %2687 = vmatpush.msra.mxu0 0.0
    %v2688 = vand.u32 %v2318, 4294901760
    %2689 = vmatpush.msra.mxu0 %v2688
    %v2690 = vand.u32 %v2314, 4294901760
    %2691 = vmatpush.msra.mxu0 %v2690
    %v2692 = vand.u32 %v2310, 4294901760
    %2693 = vmatpush.msra.mxu0 %v2692
    %v2694 = vand.u32 %v2306, 4294901760
    %2695 = vmatpush.msra.mxu0 %v2694
    %v2696 = vand.u32 %v2329, 4294901760
    %2697 = vmatmul.f32.gmra.mxu0 %v2696
    %v2698 = vpop.f32.mrf.mxu0
    %v2699 = vadd.f32 %v2674, %v2698
    %2700 = vdwg.mxu0
    %2701 = vmatpush.msra.mxu0 0.0
    %2702 = vmatpush.msra.mxu0 0.0
    %2703 = vmatpush.msra.mxu0 0.0
    %2704 = vmatpush.msra.mxu0 0.0
    %2705 = vmatpush.msra.mxu0 0.0
    %2706 = vmatpush.msra.mxu0 0.0
    %2707 = vmatpush.msra.mxu0 0.0
    %2708 = vmatpush.msra.mxu0 0.0
    %2709 = vmatpush.msra.mxu0 0.0
    %2710 = vmatpush.msra.mxu0 0.0
    %2711 = vmatpush.msra.mxu0 0.0
    %2712 = vmatpush.msra.mxu0 0.0
    %v2713 = vand.u32 %v2319, 4294901760
    %2714 = vmatpush.msra.mxu0 %v2713
    %v2715 = vand.u32 %v2315, 4294901760
    %2716 = vmatpush.msra.mxu0 %v2715
    %v2717 = vand.u32 %v2311, 4294901760
    %2718 = vmatpush.msra.mxu0 %v2717
    %v2719 = vand.u32 %v2307, 4294901760
    %2720 = vmatpush.msra.mxu0 %v2719
    %v2721 = vand.u32 %v2329, 4294901760
    %v2722 = vsub.f32 %v2329, %v2721
    %v2723 = vand.u32 %v2722, 4294901760
    %v2724 = vsub.f32 %v2722, %v2723
    %v2725 = vand.u32 %v2724, 4294901760
    %2726 = vmatmul.f32.gmra.mxu0 %v2725
    %v2727 = vpop.f32.mrf.mxu0
    %v2728 = vadd.f32 %v2326, %v2727
    %2729 = vdwg.mxu0
    %2730 = vmatpush.msra.mxu0 0.0
    %2731 = vmatpush.msra.mxu0 0.0
    %2732 = vmatpush.msra.mxu0 0.0
    %2733 = vmatpush.msra.mxu0 0.0
    %2734 = vmatpush.msra.mxu0 0.0
    %2735 = vmatpush.msra.mxu0 0.0
    %2736 = vmatpush.msra.mxu0 0.0
    %2737 = vmatpush.msra.mxu0 0.0
    %2738 = vmatpush.msra.mxu0 0.0
    %2739 = vmatpush.msra.mxu0 0.0
    %2740 = vmatpush.msra.mxu0 0.0
    %2741 = vmatpush.msra.mxu0 0.0
    %v2742 = vand.u32 %v2319, 4294901760
    %v2743 = vsub.f32 %v2319, %v2742
    %v2744 = vand.u32 %v2743, 4294901760
    %v2745 = vsub.f32 %v2743, %v2744
    %v2746 = vand.u32 %v2745, 4294901760
    %2747 = vmatpush.msra.mxu0 %v2746
    %v2748 = vand.u32 %v2315, 4294901760
    %v2749 = vsub.f32 %v2315, %v2748
    %v2750 = vand.u32 %v2749, 4294901760
    %v2751 = vsub.f32 %v2749, %v2750
    %v2752 = vand.u32 %v2751, 4294901760
    %2753 = vmatpush.msra.mxu0 %v2752
    %v2754 = vand.u32 %v2311, 4294901760
    %v2755 = vsub.f32 %v2311, %v2754
    %v2756 = vand.u32 %v2755, 4294901760
    %v2757 = vsub.f32 %v2755, %v2756
    %v2758 = vand.u32 %v2757, 4294901760
    %2759 = vmatpush.msra.mxu0 %v2758
    %v2760 = vand.u32 %v2307, 4294901760
    %v2761 = vsub.f32 %v2307, %v2760
    %v2762 = vand.u32 %v2761, 4294901760
    %v2763 = vsub.f32 %v2761, %v2762
    %v2764 = vand.u32 %v2763, 4294901760
    %2765 = vmatpush.msra.mxu0 %v2764
    %v2766 = vand.u32 %v2329, 4294901760
    %2767 = vmatmul.f32.gmra.mxu0 %v2766
    %v2768 = vpop.f32.mrf.mxu0
    %v2769 = vadd.f32 %v2728, %v2768
    %2770 = vdwg.mxu0
    %2771 = vmatpush.msra.mxu0 0.0
    %2772 = vmatpush.msra.mxu0 0.0
    %2773 = vmatpush.msra.mxu0 0.0
    %2774 = vmatpush.msra.mxu0 0.0
    %2775 = vmatpush.msra.mxu0 0.0
    %2776 = vmatpush.msra.mxu0 0.0
    %2777 = vmatpush.msra.mxu0 0.0
    %2778 = vmatpush.msra.mxu0 0.0
    %2779 = vmatpush.msra.mxu0 0.0
    %2780 = vmatpush.msra.mxu0 0.0
    %2781 = vmatpush.msra.mxu0 0.0
    %2782 = vmatpush.msra.mxu0 0.0
    %v2783 = vand.u32 %v2319, 4294901760
    %v2784 = vsub.f32 %v2319, %v2783
    %2785 = vmatpush.msra.mxu0 %v2784
    %v2786 = vand.u32 %v2315, 4294901760
    %v2787 = vsub.f32 %v2315, %v2786
    %2788 = vmatpush.msra.mxu0 %v2787
    %v2789 = vand.u32 %v2311, 4294901760
    %v2790 = vsub.f32 %v2311, %v2789
    %2791 = vmatpush.msra.mxu0 %v2790
    %v2792 = vand.u32 %v2307, 4294901760
    %v2793 = vsub.f32 %v2307, %v2792
    %2794 = vmatpush.msra.mxu0 %v2793
    %v2795 = vand.u32 %v2329, 4294901760
    %v2796 = vsub.f32 %v2329, %v2795
    %2797 = vmatmul.f32.gmra.mxu0 %v2796
    %v2798 = vpop.f32.mrf.mxu0
    %v2799 = vadd.f32 %v2769, %v2798
    %2800 = vdwg.mxu0
    %2801 = vmatpush.msra.mxu0 0.0
    %2802 = vmatpush.msra.mxu0 0.0
    %2803 = vmatpush.msra.mxu0 0.0
    %2804 = vmatpush.msra.mxu0 0.0
    %2805 = vmatpush.msra.mxu0 0.0
    %2806 = vmatpush.msra.mxu0 0.0
    %2807 = vmatpush.msra.mxu0 0.0
    %2808 = vmatpush.msra.mxu0 0.0
    %2809 = vmatpush.msra.mxu0 0.0
    %2810 = vmatpush.msra.mxu0 0.0
    %2811 = vmatpush.msra.mxu0 0.0
    %2812 = vmatpush.msra.mxu0 0.0
    %v2813 = vand.u32 %v2319, 4294901760
    %2814 = vmatpush.msra.mxu0 %v2813
    %v2815 = vand.u32 %v2315, 4294901760
    %2816 = vmatpush.msra.mxu0 %v2815
    %v2817 = vand.u32 %v2311, 4294901760
    %2818 = vmatpush.msra.mxu0 %v2817
    %v2819 = vand.u32 %v2307, 4294901760
    %2820 = vmatpush.msra.mxu0 %v2819
    %v2821 = vand.u32 %v2329, 4294901760
    %v2822 = vsub.f32 %v2329, %v2821
    %v2823 = vand.u32 %v2822, 4294901760
    %2824 = vmatmul.f32.gmra.mxu0 %v2823
    %v2825 = vpop.f32.mrf.mxu0
    %v2826 = vadd.f32 %v2799, %v2825
    %2827 = vdwg.mxu0
    %2828 = vmatpush.msra.mxu0 0.0
    %2829 = vmatpush.msra.mxu0 0.0
    %2830 = vmatpush.msra.mxu0 0.0
    %2831 = vmatpush.msra.mxu0 0.0
    %2832 = vmatpush.msra.mxu0 0.0
    %2833 = vmatpush.msra.mxu0 0.0
    %2834 = vmatpush.msra.mxu0 0.0
    %2835 = vmatpush.msra.mxu0 0.0
    %2836 = vmatpush.msra.mxu0 0.0
    %2837 = vmatpush.msra.mxu0 0.0
    %2838 = vmatpush.msra.mxu0 0.0
    %2839 = vmatpush.msra.mxu0 0.0
    %v2840 = vand.u32 %v2319, 4294901760
    %v2841 = vsub.f32 %v2319, %v2840
    %v2842 = vand.u32 %v2841, 4294901760
    %2843 = vmatpush.msra.mxu0 %v2842
    %v2844 = vand.u32 %v2315, 4294901760
    %v2845 = vsub.f32 %v2315, %v2844
    %v2846 = vand.u32 %v2845, 4294901760
    %2847 = vmatpush.msra.mxu0 %v2846
    %v2848 = vand.u32 %v2311, 4294901760
    %v2849 = vsub.f32 %v2311, %v2848
    %v2850 = vand.u32 %v2849, 4294901760
    %2851 = vmatpush.msra.mxu0 %v2850
    %v2852 = vand.u32 %v2307, 4294901760
    %v2853 = vsub.f32 %v2307, %v2852
    %v2854 = vand.u32 %v2853, 4294901760
    %2855 = vmatpush.msra.mxu0 %v2854
    %v2856 = vand.u32 %v2329, 4294901760
    %2857 = vmatmul.f32.gmra.mxu0 %v2856
    %v2858 = vpop.f32.mrf.mxu0
    %v2859 = vadd.f32 %v2826, %v2858
    %2860 = vdwg.mxu0
    %2861 = vmatpush.msra.mxu0 0.0
    %2862 = vmatpush.msra.mxu0 0.0
    %2863 = vmatpush.msra.mxu0 0.0
    %2864 = vmatpush.msra.mxu0 0.0
    %2865 = vmatpush.msra.mxu0 0.0
    %2866 = vmatpush.msra.mxu0 0.0
    %2867 = vmatpush.msra.mxu0 0.0
    %2868 = vmatpush.msra.mxu0 0.0
    %2869 = vmatpush.msra.mxu0 0.0
    %2870 = vmatpush.msra.mxu0 0.0
    %2871 = vmatpush.msra.mxu0 0.0
    %2872 = vmatpush.msra.mxu0 0.0
    %v2873 = vand.u32 %v2319, 4294901760
    %2874 = vmatpush.msra.mxu0 %v2873
    %v2875 = vand.u32 %v2315, 4294901760
    %2876 = vmatpush.msra.mxu0 %v2875
    %v2877 = vand.u32 %v2311, 4294901760
    %2878 = vmatpush.msra.mxu0 %v2877
    %v2879 = vand.u32 %v2307, 4294901760
    %2880 = vmatpush.msra.mxu0 %v2879
    %v2881 = vand.u32 %v2329, 4294901760
    %2882 = vmatmul.f32.gmra.mxu0 %v2881
    %v2883 = vpop.f32.mrf.mxu0
    %v2884 = vadd.f32 %v2859, %v2883
    %2885 = vdwg.mxu0
    %2886 = vmatpush.msra.mxu0 0.0
    %2887 = vmatpush.msra.mxu0 0.0
    %2888 = vmatpush.msra.mxu0 0.0
    %2889 = vmatpush.msra.mxu0 0.0
    %2890 = vmatpush.msra.mxu0 0.0
    %2891 = vmatpush.msra.mxu0 0.0
    %2892 = vmatpush.msra.mxu0 0.0
    %2893 = vmatpush.msra.mxu0 0.0
    %2894 = vmatpush.msra.mxu0 0.0
    %2895 = vmatpush.msra.mxu0 0.0
    %2896 = vmatpush.msra.mxu0 0.0
    %2897 = vmatpush.msra.mxu0 0.0
    %v2898 = vand.u32 %v2320, 4294901760
    %2899 = vmatpush.msra.mxu0 %v2898
    %v2900 = vand.u32 %v2316, 4294901760
    %2901 = vmatpush.msra.mxu0 %v2900
    %v2902 = vand.u32 %v2312, 4294901760
    %2903 = vmatpush.msra.mxu0 %v2902
    %v2904 = vand.u32 %v2308, 4294901760
    %2905 = vmatpush.msra.mxu0 %v2904
    %v2906 = vand.u32 %v2329, 4294901760
    %v2907 = vsub.f32 %v2329, %v2906
    %v2908 = vand.u32 %v2907, 4294901760
    %v2909 = vsub.f32 %v2907, %v2908
    %v2910 = vand.u32 %v2909, 4294901760
    %2911 = vmatmul.f32.gmra.mxu0 %v2910
    %v2912 = vpop.f32.mrf.mxu0
    %v2913 = vadd.f32 %v2326, %v2912
    %2914 = vdwg.mxu0
    %2915 = vmatpush.msra.mxu0 0.0
    %2916 = vmatpush.msra.mxu0 0.0
    %2917 = vmatpush.msra.mxu0 0.0
    %2918 = vmatpush.msra.mxu0 0.0
    %2919 = vmatpush.msra.mxu0 0.0
    %2920 = vmatpush.msra.mxu0 0.0
    %2921 = vmatpush.msra.mxu0 0.0
    %2922 = vmatpush.msra.mxu0 0.0
    %2923 = vmatpush.msra.mxu0 0.0
    %2924 = vmatpush.msra.mxu0 0.0
    %2925 = vmatpush.msra.mxu0 0.0
    %2926 = vmatpush.msra.mxu0 0.0
    %v2927 = vand.u32 %v2320, 4294901760
    %v2928 = vsub.f32 %v2320, %v2927
    %v2929 = vand.u32 %v2928, 4294901760
    %v2930 = vsub.f32 %v2928, %v2929
    %v2931 = vand.u32 %v2930, 4294901760
    %2932 = vmatpush.msra.mxu0 %v2931
    %v2933 = vand.u32 %v2316, 4294901760
    %v2934 = vsub.f32 %v2316, %v2933
    %v2935 = vand.u32 %v2934, 4294901760
    %v2936 = vsub.f32 %v2934, %v2935
    %v2937 = vand.u32 %v2936, 4294901760
    %2938 = vmatpush.msra.mxu0 %v2937
    %v2939 = vand.u32 %v2312, 4294901760
    %v2940 = vsub.f32 %v2312, %v2939
    %v2941 = vand.u32 %v2940, 4294901760
    %v2942 = vsub.f32 %v2940, %v2941
    %v2943 = vand.u32 %v2942, 4294901760
    %2944 = vmatpush.msra.mxu0 %v2943
    %v2945 = vand.u32 %v2308, 4294901760
    %v2946 = vsub.f32 %v2308, %v2945
    %v2947 = vand.u32 %v2946, 4294901760
    %v2948 = vsub.f32 %v2946, %v2947
    %v2949 = vand.u32 %v2948, 4294901760
    %2950 = vmatpush.msra.mxu0 %v2949
    %v2951 = vand.u32 %v2329, 4294901760
    %2952 = vmatmul.f32.gmra.mxu0 %v2951
    %v2953 = vpop.f32.mrf.mxu0
    %v2954 = vadd.f32 %v2913, %v2953
    %2955 = vdwg.mxu0
    %2956 = vmatpush.msra.mxu0 0.0
    %2957 = vmatpush.msra.mxu0 0.0
    %2958 = vmatpush.msra.mxu0 0.0
    %2959 = vmatpush.msra.mxu0 0.0
    %2960 = vmatpush.msra.mxu0 0.0
    %2961 = vmatpush.msra.mxu0 0.0
    %2962 = vmatpush.msra.mxu0 0.0
    %2963 = vmatpush.msra.mxu0 0.0
    %2964 = vmatpush.msra.mxu0 0.0
    %2965 = vmatpush.msra.mxu0 0.0
    %2966 = vmatpush.msra.mxu0 0.0
    %2967 = vmatpush.msra.mxu0 0.0
    %v2968 = vand.u32 %v2320, 4294901760
    %v2969 = vsub.f32 %v2320, %v2968
    %2970 = vmatpush.msra.mxu0 %v2969
    %v2971 = vand.u32 %v2316, 4294901760
    %v2972 = vsub.f32 %v2316, %v2971
    %2973 = vmatpush.msra.mxu0 %v2972
    %v2974 = vand.u32 %v2312, 4294901760
    %v2975 = vsub.f32 %v2312, %v2974
    %2976 = vmatpush.msra.mxu0 %v2975
    %v2977 = vand.u32 %v2308, 4294901760
    %v2978 = vsub.f32 %v2308, %v2977
    %2979 = vmatpush.msra.mxu0 %v2978
    %v2980 = vand.u32 %v2329, 4294901760
    %v2981 = vsub.f32 %v2329, %v2980
    %2982 = vmatmul.f32.gmra.mxu0 %v2981
    %v2983 = vpop.f32.mrf.mxu0
    %v2984 = vadd.f32 %v2954, %v2983
    %2985 = vdwg.mxu0
    %2986 = vmatpush.msra.mxu0 0.0
    %2987 = vmatpush.msra.mxu0 0.0
    %2988 = vmatpush.msra.mxu0 0.0
    %2989 = vmatpush.msra.mxu0 0.0
    %2990 = vmatpush.msra.mxu0 0.0
    %2991 = vmatpush.msra.mxu0 0.0
    %2992 = vmatpush.msra.mxu0 0.0
    %2993 = vmatpush.msra.mxu0 0.0
    %2994 = vmatpush.msra.mxu0 0.0
    %2995 = vmatpush.msra.mxu0 0.0
    %2996 = vmatpush.msra.mxu0 0.0
    %2997 = vmatpush.msra.mxu0 0.0
    %v2998 = vand.u32 %v2320, 4294901760
    %2999 = vmatpush.msra.mxu0 %v2998
    %v3000 = vand.u32 %v2316, 4294901760
    %3001 = vmatpush.msra.mxu0 %v3000
    %v3002 = vand.u32 %v2312, 4294901760
    %3003 = vmatpush.msra.mxu0 %v3002
    %v3004 = vand.u32 %v2308, 4294901760
    %3005 = vmatpush.msra.mxu0 %v3004
    %v3006 = vand.u32 %v2329, 4294901760
    %v3007 = vsub.f32 %v2329, %v3006
    %v3008 = vand.u32 %v3007, 4294901760
    %3009 = vmatmul.f32.gmra.mxu0 %v3008
    %v3010 = vpop.f32.mrf.mxu0
    %v3011 = vadd.f32 %v2984, %v3010
    %3012 = vdwg.mxu0
    %3013 = vmatpush.msra.mxu0 0.0
    %3014 = vmatpush.msra.mxu0 0.0
    %3015 = vmatpush.msra.mxu0 0.0
    %3016 = vmatpush.msra.mxu0 0.0
    %3017 = vmatpush.msra.mxu0 0.0
    %3018 = vmatpush.msra.mxu0 0.0
    %3019 = vmatpush.msra.mxu0 0.0
    %3020 = vmatpush.msra.mxu0 0.0
    %3021 = vmatpush.msra.mxu0 0.0
    %3022 = vmatpush.msra.mxu0 0.0
    %3023 = vmatpush.msra.mxu0 0.0
    %3024 = vmatpush.msra.mxu0 0.0
    %v3025 = vand.u32 %v2320, 4294901760
    %v3026 = vsub.f32 %v2320, %v3025
    %v3027 = vand.u32 %v3026, 4294901760
    %3028 = vmatpush.msra.mxu0 %v3027
    %v3029 = vand.u32 %v2316, 4294901760
    %v3030 = vsub.f32 %v2316, %v3029
    %v3031 = vand.u32 %v3030, 4294901760
    %3032 = vmatpush.msra.mxu0 %v3031
    %v3033 = vand.u32 %v2312, 4294901760
    %v3034 = vsub.f32 %v2312, %v3033
    %v3035 = vand.u32 %v3034, 4294901760
    %3036 = vmatpush.msra.mxu0 %v3035
    %v3037 = vand.u32 %v2308, 4294901760
    %v3038 = vsub.f32 %v2308, %v3037
    %v3039 = vand.u32 %v3038, 4294901760
    %3040 = vmatpush.msra.mxu0 %v3039
    %v3041 = vand.u32 %v2329, 4294901760
    %3042 = vmatmul.f32.gmra.mxu0 %v3041
    %v3043 = vpop.f32.mrf.mxu0
    %v3044 = vadd.f32 %v3011, %v3043
    %3045 = vdwg.mxu0
    %3046 = vmatpush.msra.mxu0 0.0
    %3047 = vmatpush.msra.mxu0 0.0
    %3048 = vmatpush.msra.mxu0 0.0
    %3049 = vmatpush.msra.mxu0 0.0
    %3050 = vmatpush.msra.mxu0 0.0
    %3051 = vmatpush.msra.mxu0 0.0
    %3052 = vmatpush.msra.mxu0 0.0
    %3053 = vmatpush.msra.mxu0 0.0
    %3054 = vmatpush.msra.mxu0 0.0
    %3055 = vmatpush.msra.mxu0 0.0
    %3056 = vmatpush.msra.mxu0 0.0
    %3057 = vmatpush.msra.mxu0 0.0
    %v3058 = vand.u32 %v2320, 4294901760
    %3059 = vmatpush.msra.mxu0 %v3058
    %v3060 = vand.u32 %v2316, 4294901760
    %3061 = vmatpush.msra.mxu0 %v3060
    %v3062 = vand.u32 %v2312, 4294901760
    %3063 = vmatpush.msra.mxu0 %v3062
    %v3064 = vand.u32 %v2308, 4294901760
    %3065 = vmatpush.msra.mxu0 %v3064
    %v3066 = vand.u32 %v2329, 4294901760
    %3067 = vmatmul.f32.gmra.mxu0 %v3066
    %v3068 = vpop.f32.mrf.mxu0
    %v3069 = vadd.f32 %v3044, %v3068
    %3070 = vdwg.mxu0
    %v3075 = vrot.slane %v2699, 4
    %v3076 = vrot.slane %v3069, 4
    %vm3077 = vcmask 1043456
    %v3078 = vsel %vm3077, %v2514, %v3075
    %v3079 = vsel %vm3077, %v2884, %v3076
    %3082 = vst [vmem:[#allocation2] sm:$0xff] %v3078
    %3083 = vst [vmem:[#allocation2 + $0x8] sm:$0xff] %v3079
    // Predicated region
    $region30: #{tpu_custom_call.1} parent=1 // pred_check
      _
    $region31: #{tpu_custom_call.1} parent=1 // pred_check_branch
      %3085 = sbr.rel (0) target = $region33
    $region32: #{tpu_custom_call.1} parent=1 // pred_region
      %3087 = vsyncadd [#allocation3], 0
      %s3089 = sshll.u32 [#allocation2], 4
      %s3090 = int_to_ptr.vmem [resolvable:$true] %s3089
      %s3091 = sshll.u32 %s7, 4
      %s3092 = int_to_ptr.hbm [resolvable:$true] %s3091
      %3094 = dma.vmem_to_hbm [thread:$0]  %s3090, 256, %s3092, [#allocation3]
    $region33: #{tpu_custom_call.1} parent=1 // pred_fallthru
      _
    // Predicated region
    $region34: #{tpu_custom_call.1} parent=1 // pred_check
      _
    $region35: #{tpu_custom_call.1} parent=1 // pred_check_branch
      %3096 = sbr.rel (0) target = $region37
    $region36: #{tpu_custom_call.1} parent=1 // pred_region
      %3098 = dma.done [#allocation3], 256
    $region37: #{tpu_custom_call.1} parent=1 // pred_fallthru
      _
    %3099 = vsyncpa [#allocation3], 1

</llo_original>
